<compile_context>
chip_gen: v7x
topology: tpu7x:2x2x1
jax: 0.10.0
libtpu: 0.0.40
codegen_flags: <defaults>
</compile_context>

<pallas_src>
import jax
import jax.numpy as jnp
from jax.experimental import pallas as pl
from jax.experimental.pallas import tpu as pltpu


def pointnet_kernel(x_ref,
                    w1_ref, b1_ref,
                    w2_ref, b2_ref,
                    w3_ref, b3_ref,
                    w4_ref, b4_ref,
                    w5_ref, b5_ref,
                    out_ref):
    # x_ref: (1, 3, TILE_N) channel-major tile of points for one batch element.
    x = x_ref[0]                                   # (3, TILE_N) f32

    # ---- Layer 1 on the VPU: K=3 would use <3% of the MXU contraction. ----
    w1 = w1_ref[...]                               # (64, 3) f32
    h = (w1[:, 0:1] * x[0:1, :]
         + w1[:, 1:2] * x[1:2, :]
         + w1[:, 2:3] * x[2:3, :]
         + b1_ref[...])                            # (64, TILE_N) f32
    h = jnp.maximum(h, 0.0)

    def conv_relu(h_f32, w_ref, b_ref):
        # 1x1 conv in (C, N) layout: bf16 (Cout, Cin) @ (Cin, TILE_N) on the
        # MXU with f32 accumulation; bias-add + ReLU in f32 on the VPU.
        y = jnp.dot(w_ref[...], h_f32.astype(jnp.bfloat16),
                    preferred_element_type=jnp.float32)
        return jnp.maximum(y + b_ref[...], 0.0)    # (Cout, TILE_N) f32

    h = conv_relu(h, w2_ref, b2_ref)               # (64,  TILE_N)
    h = conv_relu(h, w3_ref, b3_ref)               # (64,  TILE_N)
    h = conv_relu(h, w4_ref, b4_ref)               # (128, TILE_N)
    h = conv_relu(h, w5_ref, b5_ref)               # (emb, TILE_N)

    out_ref[0] = h.astype(out_ref.dtype)


def pointnet_forward(points, params, *, input_shape='bnc', tile_n=512,
                     out_dtype=jnp.float32):
    """Forward pass of the PyTorch PointNet module.

    points: (B, N, 3) if input_shape='bnc' (default) or (B, 3, N) if 'bcn'.
    Returns (B, emb_dims, N), matching the PyTorch forward's output layout.
    """
    if input_shape not in ('bnc', 'bcn'):
        raise ValueError("Allowed shapes are 'bcn' and 'bnc'")
    if input_shape == 'bnc':
        points = jnp.transpose(points, (0, 2, 1))  # -> (B, 3, N), tiny tensor
    B, C, N = points.shape
    assert C == 3, "PointNet expects 3 input channels"
    (w1, b1), (w2, b2), (w3, b3), (w4, b4), (w5, b5) = params
    emb = w5.shape[0]

    # Lane-friendly tile (multiple of 128).  If N is already a multiple of 128,
    # shrink tile_n to a divisor of N so there is no padding and no
    # post-kernel slice (which would re-copy the full (B, emb, N) output).
    tile_n = max(128, (tile_n // 128) * 128)
    if N % 128 == 0:
        while N % tile_n != 0:
            tile_n -= 128
    n_tiles = pl.cdiv(N, tile_n)
    n_pad = n_tiles * tile_n
    if n_pad != N:
        points = jnp.pad(points, ((0, 0), (0, 0), (0, n_pad - N)))

    def const_spec(shape):
        # Weights / biases: whole array resident, same block every grid step
        # (Pallas revisits the same block, so there is no per-step re-DMA).
        # Total constant footprint is < 1 MiB even at emb=1024, so no need to
        # single-buffer them.
        return pl.BlockSpec(shape, lambda b, nt: tuple(0 for _ in shape))

    out = pl.pallas_call(
        pointnet_kernel,
        out_shape=jax.ShapeDtypeStruct((B, emb, n_pad), out_dtype),
        grid_spec=pltpu.PrefetchScalarGridSpec(
            num_scalar_prefetch=0,
            grid=(B, n_tiles),
            in_specs=[
                pl.BlockSpec((1, 3, tile_n), lambda b, nt: (b, 0, nt)),
                const_spec(w1.shape), const_spec(b1.shape),
                const_spec(w2.shape), const_spec(b2.shape),
                const_spec(w3.shape), const_spec(b3.shape),
                const_spec(w4.shape), const_spec(b4.shape),
                const_spec(w5.shape), const_spec(b5.shape),
            ],
            out_specs=pl.BlockSpec((1, emb, tile_n), lambda b, nt: (b, 0, nt)),
        ),
        compiler_params=pltpu.CompilerParams(
            dimension_semantics=("parallel", "parallel")),
    )(points, w1, b1, w2, b2, w3, b3, w4, b4, w5, b5)

    # Ragged N (not a multiple of 128): drop the garbage tail columns.
    # TODO(synk): for ragged N, mask the tail tile's store in-kernel instead of
    # this post-kernel slice copy of the full (B, emb, N) output.
    return out[:, :, :N] if n_pad != N else out


def init_params(key, emb_dims=256):
    """Deterministic synthetic params in the layouts the kernel consumes.
    Layer 1:    w (64, 3) f32, b (64, 1) f32     -- VPU outer-product FMAs.
    Layers 2-5: w (Cout, Cin) bf16, b (Cout, 1) f32 -- bf16 MXU matmuls.
    """
    dims = [(3, 64), (64, 64), (64, 64), (64, 128), (128, emb_dims)]
    params = []
    for li, (cin, cout) in enumerate(dims):
        key, kw, kb = jax.random.split(key, 3)
        bound = 1.0 / jnp.sqrt(cin)               # mimic PyTorch default init
        w = jax.random.uniform(kw, (cout, cin), jnp.float32, -bound, bound)
        b = jax.random.uniform(kb, (cout, 1), jnp.float32, -bound, bound)
        if li > 0:
            w = w.astype(jnp.bfloat16)            # MXU-facing weights in bf16
        params.append((w, b))
    return params


def pointnet_reference(points_bnc, params):
    """Pure-JAX f32 reference of the PyTorch forward (input_shape='bnc')."""
    h = jnp.transpose(points_bnc, (0, 2, 1))                   # (B, 3, N)
    for (w, b) in params:
        h = jnp.maximum(
            jnp.einsum('oc,bcn->bon', w.astype(jnp.float32), h) + b, 0.0)
    return h                                                   # (B, emb, N)


if __name__ == "__main__":
    key = jax.random.PRNGKey(0)
    key, kx = jax.random.split(key)

    B, N, EMB = 2, 512, 256
    points = jax.random.normal(kx, (B, N, 3), jnp.float32)     # 'bnc' input
    params = init_params(key, emb_dims=EMB)

    out = pointnet_forward(points, params, input_shape='bnc', tile_n=512)
    out = jax.block_until_ready(out)

    ref = pointnet_reference(points, params)
    assert out.shape == (B, EMB, N), out.shape
    # bf16 matmul chain with f32 accumulation: allow ~3% of the output scale.
    err = float(jnp.max(jnp.abs(out - ref)))
    scale = float(jnp.max(jnp.abs(ref)))
    assert err <= 3e-2 * scale + 1e-5, (err, scale)

    print("KERNEL_OK")
</pallas_src>

<mosaic_0001>
module attributes {stable_mosaic.version = 11 : i64} {
  func.func @pointnet_kernel(%arg0: i32, %arg1: i32, %arg2: memref<1x3x512xf32, #tpu.memory_space<vmem>>, %arg3: memref<64x3xf32, #tpu.memory_space<vmem>>, %arg4: memref<64x1xf32, #tpu.memory_space<vmem>>, %arg5: memref<64x64xbf16, #tpu.memory_space<vmem>>, %arg6: memref<64x1xf32, #tpu.memory_space<vmem>>, %arg7: memref<64x64xbf16, #tpu.memory_space<vmem>>, %arg8: memref<64x1xf32, #tpu.memory_space<vmem>>, %arg9: memref<128x64xbf16, #tpu.memory_space<vmem>>, %arg10: memref<128x1xf32, #tpu.memory_space<vmem>>, %arg11: memref<256x128xbf16, #tpu.memory_space<vmem>>, %arg12: memref<256x1xf32, #tpu.memory_space<vmem>>, %arg13: memref<1x256x512xf32, #tpu.memory_space<vmem>>) attributes {dimension_semantics = [#tpu.dimension_semantics<parallel>, #tpu.dimension_semantics<parallel>], iteration_bounds = array<i64: 2, 1>, scalar_prefetch = 0 : i64, scratch_operands = 0 : i64, tpu.core_type = #tpu.core_type<tc>, window_params = [{transform_indices = @transform_0, window_bounds = array<i64: 1, 3, 512>}, {pipeline_mode = #tpu.pipeline_mode<synchronous>, transform_indices = @transform_1, window_bounds = array<i64: 64, 3>}, {pipeline_mode = #tpu.pipeline_mode<synchronous>, transform_indices = @transform_2, window_bounds = array<i64: 64, 1>}, {pipeline_mode = #tpu.pipeline_mode<synchronous>, transform_indices = @transform_3, window_bounds = array<i64: 64, 64>}, {pipeline_mode = #tpu.pipeline_mode<synchronous>, transform_indices = @transform_4, window_bounds = array<i64: 64, 1>}, {pipeline_mode = #tpu.pipeline_mode<synchronous>, transform_indices = @transform_5, window_bounds = array<i64: 64, 64>}, {pipeline_mode = #tpu.pipeline_mode<synchronous>, transform_indices = @transform_6, window_bounds = array<i64: 64, 1>}, {pipeline_mode = #tpu.pipeline_mode<synchronous>, transform_indices = @transform_7, window_bounds = array<i64: 128, 64>}, {pipeline_mode = #tpu.pipeline_mode<synchronous>, transform_indices = @transform_8, window_bounds = array<i64: 128, 1>}, {pipeline_mode = #tpu.pipeline_mode<synchronous>, transform_indices = @transform_9, window_bounds = array<i64: 256, 128>}, {pipeline_mode = #tpu.pipeline_mode<synchronous>, transform_indices = @transform_10, window_bounds = array<i64: 256, 1>}, {transform_indices = @transform_11, window_bounds = array<i64: 1, 256, 512>}]} {
    %c0 = arith.constant 0 : index
    %c0_0 = arith.constant 0 : index
    %c0_1 = arith.constant 0 : index
    %0 = vector.load %arg2[%c0, %c0_0, %c0_1] : memref<1x3x512xf32, #tpu.memory_space<vmem>>, vector<1x3x512xf32>
    %1 = vector.shape_cast %0 : vector<1x3x512xf32> to vector<3x512xf32>
    %c0_2 = arith.constant 0 : index
    %c0_3 = arith.constant 0 : index
    %2 = vector.load %arg3[%c0_2, %c0_3] : memref<64x3xf32, #tpu.memory_space<vmem>>, vector<64x3xf32>
    %3 = vector.extract_strided_slice %2 {offsets = [0, 0], sizes = [64, 1], strides = [1, 1]} : vector<64x3xf32> to vector<64x1xf32>
    %4 = vector.extract_strided_slice %1 {offsets = [0, 0], sizes = [1, 512], strides = [1, 1]} : vector<3x512xf32> to vector<1x512xf32>
    %5 = vector.broadcast %3 : vector<64x1xf32> to vector<64x512xf32>
    %6 = vector.broadcast %4 : vector<1x512xf32> to vector<64x512xf32>
    %7 = arith.mulf %5, %6 : vector<64x512xf32>
    %8 = vector.extract_strided_slice %2 {offsets = [0, 1], sizes = [64, 1], strides = [1, 1]} : vector<64x3xf32> to vector<64x1xf32>
    %9 = vector.extract_strided_slice %1 {offsets = [1, 0], sizes = [1, 512], strides = [1, 1]} : vector<3x512xf32> to vector<1x512xf32>
    %10 = vector.broadcast %8 : vector<64x1xf32> to vector<64x512xf32>
    %11 = vector.broadcast %9 : vector<1x512xf32> to vector<64x512xf32>
    %12 = arith.mulf %10, %11 : vector<64x512xf32>
    %13 = arith.addf %7, %12 : vector<64x512xf32>
    %14 = vector.extract_strided_slice %2 {offsets = [0, 2], sizes = [64, 1], strides = [1, 1]} : vector<64x3xf32> to vector<64x1xf32>
    %15 = vector.extract_strided_slice %1 {offsets = [2, 0], sizes = [1, 512], strides = [1, 1]} : vector<3x512xf32> to vector<1x512xf32>
    %16 = vector.broadcast %14 : vector<64x1xf32> to vector<64x512xf32>
    %17 = vector.broadcast %15 : vector<1x512xf32> to vector<64x512xf32>
    %18 = arith.mulf %16, %17 : vector<64x512xf32>
    %19 = arith.addf %13, %18 : vector<64x512xf32>
    %c0_4 = arith.constant 0 : index
    %c0_5 = arith.constant 0 : index
    %20 = vector.load %arg4[%c0_4, %c0_5] : memref<64x1xf32, #tpu.memory_space<vmem>>, vector<64x1xf32>
    %21 = vector.broadcast %20 : vector<64x1xf32> to vector<64x512xf32>
    %22 = arith.addf %19, %21 : vector<64x512xf32>
    %cst = arith.constant 0.000000e+00 : f32
    %23 = vector.broadcast %cst : f32 to vector<64x512xf32>
    %24 = arith.maximumf %22, %23 : vector<64x512xf32>
    %c0_6 = arith.constant 0 : index
    %c0_7 = arith.constant 0 : index
    %25 = vector.load %arg5[%c0_6, %c0_7] : memref<64x64xbf16, #tpu.memory_space<vmem>>, vector<64x64xbf16>
    %26 = arith.truncf %24 : vector<64x512xf32> to vector<64x512xbf16>
    %cst_8 = arith.constant dense<0.000000e+00> : vector<64x512xf32>
    %27 = tpu.matmul %25, %26, %cst_8 {dimension_numbers = #tpu.dot_dimension_numbers<[1], [0], [0], [1], [0, 0, 1, 1], [], []>} : vector<64x64xbf16>, vector<64x512xbf16>, vector<64x512xf32> -> vector<64x512xf32>
    %c0_9 = arith.constant 0 : index
    %c0_10 = arith.constant 0 : index
    %28 = vector.load %arg6[%c0_9, %c0_10] : memref<64x1xf32, #tpu.memory_space<vmem>>, vector<64x1xf32>
    %29 = vector.broadcast %28 : vector<64x1xf32> to vector<64x512xf32>
    %30 = arith.addf %27, %29 : vector<64x512xf32>
    %cst_11 = arith.constant 0.000000e+00 : f32
    %31 = vector.broadcast %cst_11 : f32 to vector<64x512xf32>
    %32 = arith.maximumf %30, %31 : vector<64x512xf32>
    %c0_12 = arith.constant 0 : index
    %c0_13 = arith.constant 0 : index
    %33 = vector.load %arg7[%c0_12, %c0_13] : memref<64x64xbf16, #tpu.memory_space<vmem>>, vector<64x64xbf16>
    %34 = arith.truncf %32 : vector<64x512xf32> to vector<64x512xbf16>
    %cst_14 = arith.constant dense<0.000000e+00> : vector<64x512xf32>
    %35 = tpu.matmul %33, %34, %cst_14 {dimension_numbers = #tpu.dot_dimension_numbers<[1], [0], [0], [1], [0, 0, 1, 1], [], []>} : vector<64x64xbf16>, vector<64x512xbf16>, vector<64x512xf32> -> vector<64x512xf32>
    %c0_15 = arith.constant 0 : index
    %c0_16 = arith.constant 0 : index
    %36 = vector.load %arg8[%c0_15, %c0_16] : memref<64x1xf32, #tpu.memory_space<vmem>>, vector<64x1xf32>
    %37 = vector.broadcast %36 : vector<64x1xf32> to vector<64x512xf32>
    %38 = arith.addf %35, %37 : vector<64x512xf32>
    %cst_17 = arith.constant 0.000000e+00 : f32
    %39 = vector.broadcast %cst_17 : f32 to vector<64x512xf32>
    %40 = arith.maximumf %38, %39 : vector<64x512xf32>
    %c0_18 = arith.constant 0 : index
    %c0_19 = arith.constant 0 : index
    %41 = vector.load %arg9[%c0_18, %c0_19] : memref<128x64xbf16, #tpu.memory_space<vmem>>, vector<128x64xbf16>
    %42 = arith.truncf %40 : vector<64x512xf32> to vector<64x512xbf16>
    %cst_20 = arith.constant dense<0.000000e+00> : vector<128x512xf32>
    %43 = tpu.matmul %41, %42, %cst_20 {dimension_numbers = #tpu.dot_dimension_numbers<[1], [0], [0], [1], [0, 0, 1, 1], [], []>} : vector<128x64xbf16>, vector<64x512xbf16>, vector<128x512xf32> -> vector<128x512xf32>
    %c0_21 = arith.constant 0 : index
    %c0_22 = arith.constant 0 : index
    %44 = vector.load %arg10[%c0_21, %c0_22] : memref<128x1xf32, #tpu.memory_space<vmem>>, vector<128x1xf32>
    %45 = vector.broadcast %44 : vector<128x1xf32> to vector<128x512xf32>
    %46 = arith.addf %43, %45 : vector<128x512xf32>
    %cst_23 = arith.constant 0.000000e+00 : f32
    %47 = vector.broadcast %cst_23 : f32 to vector<128x512xf32>
    %48 = arith.maximumf %46, %47 : vector<128x512xf32>
    %c0_24 = arith.constant 0 : index
    %c0_25 = arith.constant 0 : index
    %49 = vector.load %arg11[%c0_24, %c0_25] : memref<256x128xbf16, #tpu.memory_space<vmem>>, vector<256x128xbf16>
    %50 = arith.truncf %48 : vector<128x512xf32> to vector<128x512xbf16>
    %cst_26 = arith.constant dense<0.000000e+00> : vector<256x512xf32>
    %51 = tpu.matmul %49, %50, %cst_26 {dimension_numbers = #tpu.dot_dimension_numbers<[1], [0], [0], [1], [0, 0, 1, 1], [], []>} : vector<256x128xbf16>, vector<128x512xbf16>, vector<256x512xf32> -> vector<256x512xf32>
    %c0_27 = arith.constant 0 : index
    %c0_28 = arith.constant 0 : index
    %52 = vector.load %arg12[%c0_27, %c0_28] : memref<256x1xf32, #tpu.memory_space<vmem>>, vector<256x1xf32>
    %53 = vector.broadcast %52 : vector<256x1xf32> to vector<256x512xf32>
    %54 = arith.addf %51, %53 : vector<256x512xf32>
    %cst_29 = arith.constant 0.000000e+00 : f32
    %55 = vector.broadcast %cst_29 : f32 to vector<256x512xf32>
    %56 = arith.maximumf %54, %55 : vector<256x512xf32>
    %c0_30 = arith.constant 0 : index
    %c0_31 = arith.constant 0 : index
    %c0_32 = arith.constant 0 : index
    %57 = vector.load %arg13[%c0_30, %c0_31, %c0_32] : memref<1x256x512xf32, #tpu.memory_space<vmem>>, vector<1x256x512xf32>
    %58 = vector.shape_cast %57 : vector<1x256x512xf32> to vector<256x512xf32>
    %59 = vector.shape_cast %56 : vector<256x512xf32> to vector<1x256x512xf32>
    tpu.vector_store %arg13[%c0_30, %c0_31, %c0_32], %59 {strides = array<i32>} : memref<1x256x512xf32, #tpu.memory_space<vmem>>, vector<1x256x512xf32>,
    return
  }
  func.func @transform_0(%arg0: i32, %arg1: i32) -> (i32, i32, i32) {
    %c0_i32 = arith.constant 0 : i32
    %c0_i32_0 = arith.constant 0 : i32
    return %arg0, %c0_i32, %arg1 : i32, i32, i32
  }
  func.func @transform_1(%arg0: i32, %arg1: i32) -> (i32, i32) {
    %c0_i32 = arith.constant 0 : i32
    %c0_i32_0 = arith.constant 0 : i32
    %c0_i32_1 = arith.constant 0 : i32
    return %c0_i32, %c0_i32_0 : i32, i32
  }
  func.func @transform_2(%arg0: i32, %arg1: i32) -> (i32, i32) {
    %c0_i32 = arith.constant 0 : i32
    %c0_i32_0 = arith.constant 0 : i32
    %c0_i32_1 = arith.constant 0 : i32
    return %c0_i32, %c0_i32_0 : i32, i32
  }
  func.func @transform_3(%arg0: i32, %arg1: i32) -> (i32, i32) {
    %c0_i32 = arith.constant 0 : i32
    %c0_i32_0 = arith.constant 0 : i32
    %c0_i32_1 = arith.constant 0 : i32
    return %c0_i32, %c0_i32_0 : i32, i32
  }
  func.func @transform_4(%arg0: i32, %arg1: i32) -> (i32, i32) {
    %c0_i32 = arith.constant 0 : i32
    %c0_i32_0 = arith.constant 0 : i32
    %c0_i32_1 = arith.constant 0 : i32
    return %c0_i32, %c0_i32_0 : i32, i32
  }
  func.func @transform_5(%arg0: i32, %arg1: i32) -> (i32, i32) {
    %c0_i32 = arith.constant 0 : i32
    %c0_i32_0 = arith.constant 0 : i32
    %c0_i32_1 = arith.constant 0 : i32
    return %c0_i32, %c0_i32_0 : i32, i32
  }
  func.func @transform_6(%arg0: i32, %arg1: i32) -> (i32, i32) {
    %c0_i32 = arith.constant 0 : i32
    %c0_i32_0 = arith.constant 0 : i32
    %c0_i32_1 = arith.constant 0 : i32
    return %c0_i32, %c0_i32_0 : i32, i32
  }
  func.func @transform_7(%arg0: i32, %arg1: i32) -> (i32, i32) {
    %c0_i32 = arith.constant 0 : i32
    %c0_i32_0 = arith.constant 0 : i32
    %c0_i32_1 = arith.constant 0 : i32
    return %c0_i32, %c0_i32_0 : i32, i32
  }
  func.func @transform_8(%arg0: i32, %arg1: i32) -> (i32, i32) {
    %c0_i32 = arith.constant 0 : i32
    %c0_i32_0 = arith.constant 0 : i32
    %c0_i32_1 = arith.constant 0 : i32
    return %c0_i32, %c0_i32_0 : i32, i32
  }
  func.func @transform_9(%arg0: i32, %arg1: i32) -> (i32, i32) {
    %c0_i32 = arith.constant 0 : i32
    %c0_i32_0 = arith.constant 0 : i32
    %c0_i32_1 = arith.constant 0 : i32
    return %c0_i32, %c0_i32_0 : i32, i32
  }
  func.func @transform_10(%arg0: i32, %arg1: i32) -> (i32, i32) {
    %c0_i32 = arith.constant 0 : i32
    %c0_i32_0 = arith.constant 0 : i32
    %c0_i32_1 = arith.constant 0 : i32
    return %c0_i32, %c0_i32_0 : i32, i32
  }
  func.func @transform_11(%arg0: i32, %arg1: i32) -> (i32, i32, i32) {
    %c0_i32 = arith.constant 0 : i32
    %c0_i32_0 = arith.constant 0 : i32
    return %arg0, %c0_i32, %arg1 : i32, i32, i32
  }
}

</mosaic_0001>

<llo_original>
// kernel: tpu_custom_call.1
$region0: #{tpu_custom_call.1}
  #allocation0 [shape = 'u32[]', space=smem, size = 0x4, offset = 0x4, fixed_abs, tag = 'smem constant byte address 0x4 - core index']
  #allocation1 [shape = 'u32[144,128]{1,0:T(1,128)}', space=vmem, size = 0x12000, scoped, tag = 'internal scratch']
  %s0 = inlined_call_operand.vmem [shape: f32[2,3,512], index: 0, kind: input, shape index: {}]
  %s1 = inlined_call_operand.vmem [shape: f32[64,3], index: 1, kind: input, shape index: {}]
  %s2 = inlined_call_operand.vmem [shape: f32[64,1], index: 2, kind: input, shape index: {}]
  %s3 = inlined_call_operand.vmem [shape: bf16[64,64], index: 3, kind: input, shape index: {}]
  %s4 = inlined_call_operand.vmem [shape: f32[64,1], index: 4, kind: input, shape index: {}]
  %s5 = inlined_call_operand.vmem [shape: bf16[64,64], index: 5, kind: input, shape index: {}]
  %s6 = inlined_call_operand.vmem [shape: f32[64,1], index: 6, kind: input, shape index: {}]
  %s7 = inlined_call_operand.vmem [shape: bf16[128,64], index: 7, kind: input, shape index: {}]
  %s8 = inlined_call_operand.vmem [shape: f32[128,1], index: 8, kind: input, shape index: {}]
  %s9 = inlined_call_operand.vmem [shape: bf16[256,128], index: 9, kind: input, shape index: {}]
  %s10 = inlined_call_operand.vmem [shape: f32[256,1], index: 10, kind: input, shape index: {}]
  %s11 = inlined_call_operand.hbm [shape: f32[2,256,512], index: 11, kind: output, shape index: {}]
  %s12 = sld [smem:[#allocation0]]
  $region77: #{tpu_custom_call.1} parent=0
    _
  %s14 = ssub.s32 1, %s12
  %s15 = scalar_select 0, %s14, %s12
  $region1: #{tpu_custom_call.1} parent=0
    #allocation2 [shape = 'u8[1048576]{0}', space=vmem, size = 0x100000, scoped, tag = 'output window, operand 0']
    #allocation3 [shape = 's32[2]{0}', space=sflag, size = 0x8, scoped, tag = 'scoped memory for tpu_custom_call.1']
    %16 = vsyncpa [#allocation3], 0
    %s17 = scalar_lea.sflag [#allocation3], 1
    %18 = vsyncpa %s17, 0
    loop: start=0, step=1, limit=4
    $region2: #{tpu_custom_call.1} parent=1 // loop_pre_header
      _
    $region3: #{tpu_custom_call.1} parent=1 // loop_header
      %s20 = sphi 0, %s24
      %p21 = scmp.ge.s32.totalorder %s20, 4
      %s27 = sphi 0, %s39
      %s28 = sphi 0, %s35
      %s29 = sphi 0, %s27
      %s30 = sphi 0, %s28
      %s31 = sphi 0, %s29
      %s32 = sphi 0, %s30
      %s44 = sphi 0, %s46
      %s47 = sphi 0, %s44
      %s48 = sphi 0, %s47
      %s64 = sphi 0, %s48
      %s68 = sphi 0, %s68
      %s70 = sphi 0, %s68
      %s71 = sphi 0, %s70
      %s85 = sphi 0, %s71
      %s89 = sphi 0, %s89
      %s91 = sphi 0, %s89
      %s92 = sphi 0, %s91
      %s106 = sphi 0, %s92
      %s110 = sphi 0, %s110
      %s112 = sphi 0, %s110
      %s113 = sphi 0, %s112
      %s127 = sphi 0, %s113
      %s131 = sphi 0, %s131
      %s133 = sphi 0, %s131
      %s134 = sphi 0, %s133
      %s148 = sphi 0, %s134
      %s152 = sphi 0, %s152
      %s154 = sphi 0, %s152
      %s155 = sphi 0, %s154
      %s169 = sphi 0, %s155
      %s173 = sphi 0, %s173
      %s175 = sphi 0, %s173
      %s176 = sphi 0, %s175
      %s190 = sphi 0, %s176
      %s194 = sphi 0, %s194
      %s196 = sphi 0, %s194
      %s197 = sphi 0, %s196
      %s211 = sphi 0, %s197
      %s215 = sphi 0, %s215
      %s217 = sphi 0, %s215
      %s218 = sphi 0, %s217
      %s232 = sphi 0, %s218
      %s236 = sphi 0, %s236
      %s238 = sphi 0, %s236
      %s239 = sphi 0, %s238
      %s253 = sphi 0, %s239
      %s257 = sphi 0, %s257
      %s259 = sphi 0, %s257
      %s260 = sphi 0, %s259
      %s274 = sphi 0, %s260
      %s282 = sphi 0, %s284
      %s285 = sphi 0, %s282
      %s286 = sphi 0, %s285
      %s302 = sphi 0, %s286
    $region4: #{tpu_custom_call.1} parent=1 // loop_header_branch
      %23 = sbr.rel (%p21) target = $region8
    $region5: #{tpu_custom_call.1} parent=1 // loop_body
      %s25 = ssub.s32 %s20, 1
      %s26 = ssub.s32 %s20, 2
      %s33 = sadd.s32 1, %s28
      %p34 = scmp.ge.s32.totalorder %s33, 1
      %s35 = scalar_select %p34, 0, %s33
      %s36 = sadd.s32 1, %s27
      %s37 = scalar_select %p34, %s36, %s27
      %p38 = scmp.ge.s32.totalorder %s37, 2
      %s39 = scalar_select %p38, 0, %s37
      %s40 = ssub.s32 %s27, %s39
      %s41 = ssub.s32 %s28, %s35
      %s42 = sor.u32 %s40, %s41
      %p43 = scmp.eq.s32.totalorder %s42, 0
      %s45 = sadd.s32 %s44, 1
      %s46 = scalar_select %p43, %s44, %s45
      %p49 = pneg %p43
      %p50 = scmp.eq.s32.totalorder %s20, 1
      %p51 = por %p49, %p50
      %p52 = scmp.ne.s32.totalorder %s44, %s47
      %p53 = scmp.eq.s32.totalorder %s20, 0
      %p54 = por %p52, %p53
      %p55 = scmp.ne.s32.totalorder %s44, %s47
      %p56 = scmp.eq.s32.totalorder %s25, 1
      %p57 = por %p55, %p56
      %p58 = scmp.ne.s32.totalorder %s47, %s48
      %p59 = scmp.eq.s32.totalorder %s25, 0
      %p60 = por %p58, %p59
      %p61 = scmp.ne.s32.totalorder %s47, %s48
      %p62 = scmp.eq.s32.totalorder %s26, 1
      %p63 = por %p61, %p62
      %p65 = scmp.ne.s32.totalorder %s48, %s64
      %p66 = scmp.eq.s32.totalorder %s26, 0
      %p67 = por %p65, %p66
      %s69 = sadd.s32 %s68, 1
      %p72 = scmp.eq.s32.totalorder %s20, 1
      %p73 = scmp.ne.s32.totalorder %s68, %s70
      %p74 = scmp.eq.s32.totalorder %s20, 0
      %p75 = por %p73, %p74
      %p76 = scmp.ne.s32.totalorder %s68, %s70
      %p77 = scmp.eq.s32.totalorder %s25, 1
      %p78 = por %p76, %p77
      %p79 = scmp.ne.s32.totalorder %s70, %s71
      %p80 = scmp.eq.s32.totalorder %s25, 0
      %p81 = por %p79, %p80
      %p82 = scmp.ne.s32.totalorder %s70, %s71
      %p83 = scmp.eq.s32.totalorder %s26, 1
      %p84 = por %p82, %p83
      %p86 = scmp.ne.s32.totalorder %s71, %s85
      %p87 = scmp.eq.s32.totalorder %s26, 0
      %p88 = por %p86, %p87
      %s90 = sadd.s32 %s89, 1
      %p93 = scmp.eq.s32.totalorder %s20, 1
      %p94 = scmp.ne.s32.totalorder %s89, %s91
      %p95 = scmp.eq.s32.totalorder %s20, 0
      %p96 = por %p94, %p95
      %p97 = scmp.ne.s32.totalorder %s89, %s91
      %p98 = scmp.eq.s32.totalorder %s25, 1
      %p99 = por %p97, %p98
      %p100 = scmp.ne.s32.totalorder %s91, %s92
      %p101 = scmp.eq.s32.totalorder %s25, 0
      %p102 = por %p100, %p101
      %p103 = scmp.ne.s32.totalorder %s91, %s92
      %p104 = scmp.eq.s32.totalorder %s26, 1
      %p105 = por %p103, %p104
      %p107 = scmp.ne.s32.totalorder %s92, %s106
      %p108 = scmp.eq.s32.totalorder %s26, 0
      %p109 = por %p107, %p108
      %s111 = sadd.s32 %s110, 1
      %p114 = scmp.eq.s32.totalorder %s20, 1
      %p115 = scmp.ne.s32.totalorder %s110, %s112
      %p116 = scmp.eq.s32.totalorder %s20, 0
      %p117 = por %p115, %p116
      %p118 = scmp.ne.s32.totalorder %s110, %s112
      %p119 = scmp.eq.s32.totalorder %s25, 1
      %p120 = por %p118, %p119
      %p121 = scmp.ne.s32.totalorder %s112, %s113
      %p122 = scmp.eq.s32.totalorder %s25, 0
      %p123 = por %p121, %p122
      %p124 = scmp.ne.s32.totalorder %s112, %s113
      %p125 = scmp.eq.s32.totalorder %s26, 1
      %p126 = por %p124, %p125
      %p128 = scmp.ne.s32.totalorder %s113, %s127
      %p129 = scmp.eq.s32.totalorder %s26, 0
      %p130 = por %p128, %p129
      %s132 = sadd.s32 %s131, 1
      %p135 = scmp.eq.s32.totalorder %s20, 1
      %p136 = scmp.ne.s32.totalorder %s131, %s133
      %p137 = scmp.eq.s32.totalorder %s20, 0
      %p138 = por %p136, %p137
      %p139 = scmp.ne.s32.totalorder %s131, %s133
      %p140 = scmp.eq.s32.totalorder %s25, 1
      %p141 = por %p139, %p140
      %p142 = scmp.ne.s32.totalorder %s133, %s134
      %p143 = scmp.eq.s32.totalorder %s25, 0
      %p144 = por %p142, %p143
      %p145 = scmp.ne.s32.totalorder %s133, %s134
      %p146 = scmp.eq.s32.totalorder %s26, 1
      %p147 = por %p145, %p146
      %p149 = scmp.ne.s32.totalorder %s134, %s148
      %p150 = scmp.eq.s32.totalorder %s26, 0
      %p151 = por %p149, %p150
      %s153 = sadd.s32 %s152, 1
      %p156 = scmp.eq.s32.totalorder %s20, 1
      %p157 = scmp.ne.s32.totalorder %s152, %s154
      %p158 = scmp.eq.s32.totalorder %s20, 0
      %p159 = por %p157, %p158
      %p160 = scmp.ne.s32.totalorder %s152, %s154
      %p161 = scmp.eq.s32.totalorder %s25, 1
      %p162 = por %p160, %p161
      %p163 = scmp.ne.s32.totalorder %s154, %s155
      %p164 = scmp.eq.s32.totalorder %s25, 0
      %p165 = por %p163, %p164
      %p166 = scmp.ne.s32.totalorder %s154, %s155
      %p167 = scmp.eq.s32.totalorder %s26, 1
      %p168 = por %p166, %p167
      %p170 = scmp.ne.s32.totalorder %s155, %s169
      %p171 = scmp.eq.s32.totalorder %s26, 0
      %p172 = por %p170, %p171
      %s174 = sadd.s32 %s173, 1
      %p177 = scmp.eq.s32.totalorder %s20, 1
      %p178 = scmp.ne.s32.totalorder %s173, %s175
      %p179 = scmp.eq.s32.totalorder %s20, 0
      %p180 = por %p178, %p179
      %p181 = scmp.ne.s32.totalorder %s173, %s175
      %p182 = scmp.eq.s32.totalorder %s25, 1
      %p183 = por %p181, %p182
      %p184 = scmp.ne.s32.totalorder %s175, %s176
      %p185 = scmp.eq.s32.totalorder %s25, 0
      %p186 = por %p184, %p185
      %p187 = scmp.ne.s32.totalorder %s175, %s176
      %p188 = scmp.eq.s32.totalorder %s26, 1
      %p189 = por %p187, %p188
      %p191 = scmp.ne.s32.totalorder %s176, %s190
      %p192 = scmp.eq.s32.totalorder %s26, 0
      %p193 = por %p191, %p192
      %s195 = sadd.s32 %s194, 1
      %p198 = scmp.eq.s32.totalorder %s20, 1
      %p199 = scmp.ne.s32.totalorder %s194, %s196
      %p200 = scmp.eq.s32.totalorder %s20, 0
      %p201 = por %p199, %p200
      %p202 = scmp.ne.s32.totalorder %s194, %s196
      %p203 = scmp.eq.s32.totalorder %s25, 1
      %p204 = por %p202, %p203
      %p205 = scmp.ne.s32.totalorder %s196, %s197
      %p206 = scmp.eq.s32.totalorder %s25, 0
      %p207 = por %p205, %p206
      %p208 = scmp.ne.s32.totalorder %s196, %s197
      %p209 = scmp.eq.s32.totalorder %s26, 1
      %p210 = por %p208, %p209
      %p212 = scmp.ne.s32.totalorder %s197, %s211
      %p213 = scmp.eq.s32.totalorder %s26, 0
      %p214 = por %p212, %p213
      %s216 = sadd.s32 %s215, 1
      %p219 = scmp.eq.s32.totalorder %s20, 1
      %p220 = scmp.ne.s32.totalorder %s215, %s217
      %p221 = scmp.eq.s32.totalorder %s20, 0
      %p222 = por %p220, %p221
      %p223 = scmp.ne.s32.totalorder %s215, %s217
      %p224 = scmp.eq.s32.totalorder %s25, 1
      %p225 = por %p223, %p224
      %p226 = scmp.ne.s32.totalorder %s217, %s218
      %p227 = scmp.eq.s32.totalorder %s25, 0
      %p228 = por %p226, %p227
      %p229 = scmp.ne.s32.totalorder %s217, %s218
      %p230 = scmp.eq.s32.totalorder %s26, 1
      %p231 = por %p229, %p230
      %p233 = scmp.ne.s32.totalorder %s218, %s232
      %p234 = scmp.eq.s32.totalorder %s26, 0
      %p235 = por %p233, %p234
      %s237 = sadd.s32 %s236, 1
      %p240 = scmp.eq.s32.totalorder %s20, 1
      %p241 = scmp.ne.s32.totalorder %s236, %s238
      %p242 = scmp.eq.s32.totalorder %s20, 0
      %p243 = por %p241, %p242
      %p244 = scmp.ne.s32.totalorder %s236, %s238
      %p245 = scmp.eq.s32.totalorder %s25, 1
      %p246 = por %p244, %p245
      %p247 = scmp.ne.s32.totalorder %s238, %s239
      %p248 = scmp.eq.s32.totalorder %s25, 0
      %p249 = por %p247, %p248
      %p250 = scmp.ne.s32.totalorder %s238, %s239
      %p251 = scmp.eq.s32.totalorder %s26, 1
      %p252 = por %p250, %p251
      %p254 = scmp.ne.s32.totalorder %s239, %s253
      %p255 = scmp.eq.s32.totalorder %s26, 0
      %p256 = por %p254, %p255
      %s258 = sadd.s32 %s257, 1
      %p261 = scmp.eq.s32.totalorder %s20, 1
      %p262 = scmp.ne.s32.totalorder %s257, %s259
      %p263 = scmp.eq.s32.totalorder %s20, 0
      %p264 = por %p262, %p263
      %p265 = scmp.ne.s32.totalorder %s257, %s259
      %p266 = scmp.eq.s32.totalorder %s25, 1
      %p267 = por %p265, %p266
      %p268 = scmp.ne.s32.totalorder %s259, %s260
      %p269 = scmp.eq.s32.totalorder %s25, 0
      %p270 = por %p268, %p269
      %p271 = scmp.ne.s32.totalorder %s259, %s260
      %p272 = scmp.eq.s32.totalorder %s26, 1
      %p273 = por %p271, %p272
      %p275 = scmp.ne.s32.totalorder %s260, %s274
      %p276 = scmp.eq.s32.totalorder %s26, 0
      %p277 = por %p275, %p276
      %s278 = ssub.s32 %s27, %s39
      %s279 = ssub.s32 %s28, %s35
      %s280 = sor.u32 %s278, %s279
      %p281 = scmp.eq.s32.totalorder %s280, 0
      %s283 = sadd.s32 %s282, 1
      %s284 = scalar_select %p281, %s282, %s283
      %p287 = pneg %p281
      %p288 = scmp.eq.s32.totalorder %s20, 1
      %p289 = por %p287, %p288
      %p290 = scmp.ne.s32.totalorder %s282, %s285
      %p291 = scmp.eq.s32.totalorder %s20, 0
      %p292 = por %p290, %p291
      %p293 = scmp.ne.s32.totalorder %s282, %s285
      %p294 = scmp.eq.s32.totalorder %s25, 1
      %p295 = por %p293, %p294
      %p296 = scmp.ne.s32.totalorder %s285, %s286
      %p297 = scmp.eq.s32.totalorder %s25, 0
      %p298 = por %p296, %p297
      %p299 = scmp.ne.s32.totalorder %s285, %s286
      %p300 = scmp.eq.s32.totalorder %s26, 1
      %p301 = por %p299, %p300
      %p303 = scmp.ne.s32.totalorder %s286, %s302
      %p304 = scmp.eq.s32.totalorder %s26, 0
      %p305 = por %p303, %p304
      %p306 = scmp.le.s32.totalorder 1, %s20
      %p307 = scmp.lt.s32.totalorder %s20, 3
      %p308 = pnand %p306, %p307
      %p309 = pneg %p308
      // Predicated region
      $region9: #{tpu_custom_call.1} parent=5 // pred_check
        _
      $region10: #{tpu_custom_call.1} parent=5 // pred_check_branch
        %311 = sbr.rel (%p308) target = $region12
      $region11: #{tpu_custom_call.1} parent=5 // pred_region
        %s312 = ssub.s32 %s20, 1
        // Predicated region
        $region13: #{tpu_custom_call.1} parent=11 // pred_check
          %p313 = pneg %p81
        $region14: #{tpu_custom_call.1} parent=11 // pred_check_branch
          %315 = sbr.rel (%p313) target = $region16
        $region15: #{tpu_custom_call.1} parent=11 // pred_region
          _
        $region16: #{tpu_custom_call.1} parent=11 // pred_fallthru
          _
        // Predicated region
        $region17: #{tpu_custom_call.1} parent=11 // pred_check
          %p316 = pneg %p102
        $region18: #{tpu_custom_call.1} parent=11 // pred_check_branch
          %318 = sbr.rel (%p316) target = $region20
        $region19: #{tpu_custom_call.1} parent=11 // pred_region
          _
        $region20: #{tpu_custom_call.1} parent=11 // pred_fallthru
          _
        // Predicated region
        $region21: #{tpu_custom_call.1} parent=11 // pred_check
          %p319 = pneg %p123
        $region22: #{tpu_custom_call.1} parent=11 // pred_check_branch
          %321 = sbr.rel (%p319) target = $region24
        $region23: #{tpu_custom_call.1} parent=11 // pred_region
          _
        $region24: #{tpu_custom_call.1} parent=11 // pred_fallthru
          _
        // Predicated region
        $region25: #{tpu_custom_call.1} parent=11 // pred_check
          %p322 = pneg %p144
        $region26: #{tpu_custom_call.1} parent=11 // pred_check_branch
          %324 = sbr.rel (%p322) target = $region28
        $region27: #{tpu_custom_call.1} parent=11 // pred_region
          _
        $region28: #{tpu_custom_call.1} parent=11 // pred_fallthru
          _
        // Predicated region
        $region29: #{tpu_custom_call.1} parent=11 // pred_check
          %p325 = pneg %p165
        $region30: #{tpu_custom_call.1} parent=11 // pred_check_branch
          %327 = sbr.rel (%p325) target = $region32
        $region31: #{tpu_custom_call.1} parent=11 // pred_region
          _
        $region32: #{tpu_custom_call.1} parent=11 // pred_fallthru
          _
        // Predicated region
        $region33: #{tpu_custom_call.1} parent=11 // pred_check
          %p328 = pneg %p186
        $region34: #{tpu_custom_call.1} parent=11 // pred_check_branch
          %330 = sbr.rel (%p328) target = $region36
        $region35: #{tpu_custom_call.1} parent=11 // pred_region
          _
        $region36: #{tpu_custom_call.1} parent=11 // pred_fallthru
          _
        // Predicated region
        $region37: #{tpu_custom_call.1} parent=11 // pred_check
          %p331 = pneg %p207
        $region38: #{tpu_custom_call.1} parent=11 // pred_check_branch
          %333 = sbr.rel (%p331) target = $region40
        $region39: #{tpu_custom_call.1} parent=11 // pred_region
          _
        $region40: #{tpu_custom_call.1} parent=11 // pred_fallthru
          _
        // Predicated region
        $region41: #{tpu_custom_call.1} parent=11 // pred_check
          %p334 = pneg %p228
        $region42: #{tpu_custom_call.1} parent=11 // pred_check_branch
          %336 = sbr.rel (%p334) target = $region44
        $region43: #{tpu_custom_call.1} parent=11 // pred_region
          _
        $region44: #{tpu_custom_call.1} parent=11 // pred_fallthru
          _
        // Predicated region
        $region45: #{tpu_custom_call.1} parent=11 // pred_check
          %p337 = pneg %p249
        $region46: #{tpu_custom_call.1} parent=11 // pred_check_branch
          %339 = sbr.rel (%p337) target = $region48
        $region47: #{tpu_custom_call.1} parent=11 // pred_region
          _
        $region48: #{tpu_custom_call.1} parent=11 // pred_fallthru
          _
        // Predicated region
        $region49: #{tpu_custom_call.1} parent=11 // pred_check
          %p340 = pneg %p270
        $region50: #{tpu_custom_call.1} parent=11 // pred_check_branch
          %342 = sbr.rel (%p340) target = $region52
        $region51: #{tpu_custom_call.1} parent=11 // pred_region
          _
        $region52: #{tpu_custom_call.1} parent=11 // pred_fallthru
          _
      $region12: #{tpu_custom_call.1} parent=5 // pred_fallthru
        _
      %p343 = scmp.lt.s32.totalorder %s20, 2
      // Predicated region
      $region53: #{tpu_custom_call.1} parent=5 // pred_check
        %p344 = pneg %p343
      $region54: #{tpu_custom_call.1} parent=5 // pred_check_branch
        %346 = sbr.rel (%p344) target = $region56
      $region55: #{tpu_custom_call.1} parent=5 // pred_region
        // Predicated region
        $region57: #{tpu_custom_call.1} parent=55 // pred_check
          %p347 = pneg %p54
        $region58: #{tpu_custom_call.1} parent=55 // pred_check_branch
          %349 = sbr.rel (%p347) target = $region60
        $region59: #{tpu_custom_call.1} parent=55 // pred_region
          %s350 = smul.u32 4, %s28
          %p351 = scmp.lt.s32.totalorder %s27, 1
          %s352 = scalar_select %p351, %s27, 1
          %p353 = scmp.lt.s32.totalorder %s350, 3
          %s354 = scalar_select %p353, %s350, 3
          %s355 = smul.addr %s352, 4
          %s356 = sadd.s32 %s354, %s355
          %s357 = smul.addr %s356, 4
          %s358 = scalar_lea.vmem %s0, %s357
          %s359 = smul.u32 4, %s28
        $region60: #{tpu_custom_call.1} parent=55 // pred_fallthru
          _
      $region56: #{tpu_custom_call.1} parent=5 // pred_fallthru
        _
      %p360 = scmp.le.s32.totalorder 1, %s20
      %p361 = scmp.lt.s32.totalorder %s20, 3
      %p362 = pnand %p360, %p361
      %p363 = pneg %p362
      // Predicated region
      $region61: #{tpu_custom_call.1} parent=5 // pred_check
        _
      $region62: #{tpu_custom_call.1} parent=5 // pred_check_branch
        %365 = sbr.rel (%p362) target = $region64
      $region63: #{tpu_custom_call.1} parent=5 // pred_region
        %s366 = ssub.s32 %s20, 1
        %s367 = smul.u32 4, %s30
        %p368 = scmp.lt.s32.totalorder %s29, 1
        %s369 = scalar_select %p368, %s29, 1
        %p370 = scmp.lt.s32.totalorder %s367, 3
        %s371 = scalar_select %p370, %s367, 3
        %s372 = smul.addr %s369, 4
        %s373 = sadd.s32 %s371, %s372
        %s374 = smul.addr %s373, 4
        %s375 = scalar_lea.vmem %s0, %s374
        %p376 = pneg %p60
        %p377 = pneg %p57
        %p378 = pneg %p81
        %p379 = pneg %p78
        %p380 = pneg %p102
        %p381 = pneg %p99
        %p382 = pneg %p123
        %p383 = pneg %p120
        %p384 = pneg %p144
        %p385 = pneg %p141
        %p386 = pneg %p165
        %p387 = pneg %p162
        %p388 = pneg %p186
        %p389 = pneg %p183
        %p390 = pneg %p207
        %p391 = pneg %p204
        %p392 = pneg %p228
        %p393 = pneg %p225
        %p394 = pneg %p249
        %p395 = pneg %p246
        %p396 = pneg %p270
        %p397 = pneg %p267
        %p398 = pneg %p298
        %p399 = pneg %p295
        %s400 = sand.u32 %s285, 1
        %s401 = scalar_lea.sflag [#allocation3], %s400
        %s402 = sand.u32 %s285, 1
        %s403 = smul.addr %s402, 1024
        %s404 = scalar_lea.vmem [#allocation2], %s403
        %s405 = smul.u32 4, %s30
        %p406 = scmp.lt.s32.totalorder %s29, 1
        %s407 = scalar_select %p406, %s29, 1
        %p408 = scmp.lt.s32.totalorder %s405, 3
        %s409 = scalar_select %p408, %s405, 3
        %s410 = smul.addr %s407, 4
        %s411 = sadd.s32 %s409, %s410
        %s412 = smul.addr %s411, 4
        %s413 = scalar_lea.vmem %s0, %s412
        %s414 = smul.u32 4, %s30
        %s415 = smul.u32 4, %s30
        %v417 = vld [vmem:[%s413] sm:$0x77]
        %v418 = vld [vmem:[%s413 + $0x8] sm:$0x77]
        %v419 = vld [vmem:[%s1] sm:$0xff]
        %v420 = vld [vmem:[%s1 + $0x8] sm:$0xff]
        %v421 = vld [vmem:[%s1 + $0x10] sm:$0xff]
        %v422 = vld [vmem:[%s1 + $0x18] sm:$0xff]
        %v423 = vld [vmem:[%s1 + $0x20] sm:$0xff]
        %v424 = vld [vmem:[%s1 + $0x28] sm:$0xff]
        %v425 = vld [vmem:[%s1 + $0x30] sm:$0xff]
        %v426 = vld [vmem:[%s1 + $0x38] sm:$0xff]
        %428 = vset.pattern.permute.xlu0 0
        %429 = vperm.xlu0 %428, %v419
        %v430 = vpop.permute.xlu0 %429
        %433 = vset.pattern.permute.xlu0 0
        %434 = vperm.xlu0 %433, %v420
        %v435 = vpop.permute.xlu0 %434
        %438 = vset.pattern.permute.xlu0 0
        %439 = vperm.xlu0 %438, %v421
        %v440 = vpop.permute.xlu0 %439
        %443 = vset.pattern.permute.xlu0 0
        %444 = vperm.xlu0 %443, %v422
        %v445 = vpop.permute.xlu0 %444
        %448 = vset.pattern.permute.xlu0 0
        %449 = vperm.xlu0 %448, %v423
        %v450 = vpop.permute.xlu0 %449
        %453 = vset.pattern.permute.xlu0 0
        %454 = vperm.xlu0 %453, %v424
        %v455 = vpop.permute.xlu0 %454
        %458 = vset.pattern.permute.xlu0 0
        %459 = vperm.xlu0 %458, %v425
        %v460 = vpop.permute.xlu0 %459
        %463 = vset.pattern.permute.xlu0 0
        %464 = vperm.xlu0 %463, %v426
        %v465 = vpop.permute.xlu0 %464
        %v469 = vlaneseq
        %v470 = vshrl.u32 %v469, 7
        %v471 = vsub.s32 0, %v470
        %v472 = vrot.slane %v417, %v471
        %v473 = vlaneseq
        %v474 = vshrl.u32 %v473, 7
        %v475 = vsub.s32 4, %v474
        %v476 = vrot.slane %v417, %v475
        %v477 = vlaneseq
        %v478 = vshrl.u32 %v477, 7
        %v479 = vsub.s32 0, %v478
        %v480 = vrot.slane %v418, %v479
        %v481 = vlaneseq
        %v482 = vshrl.u32 %v481, 7
        %v483 = vsub.s32 4, %v482
        %v484 = vrot.slane %v418, %v483
        %v489 = vlaneseq
        %v490 = vshrl.u32 %v489, 7
        %v491 = vsub.s32 0, %v490
        %v492 = vrot.slane %v472, %v491
        %v493 = vlaneseq
        %v494 = vshrl.u32 %v493, 7
        %v495 = vsub.s32 0, %v494
        %v496 = vrot.slane %v476, %v495
        %v497 = vlaneseq
        %v498 = vshrl.u32 %v497, 7
        %v499 = vsub.s32 0, %v498
        %v500 = vrot.slane %v480, %v499
        %v501 = vlaneseq
        %v502 = vshrl.u32 %v501, 7
        %v503 = vsub.s32 0, %v502
        %v504 = vrot.slane %v484, %v503
        %v505 = vmul.f32 %v430, %v492
        %v506 = vmul.f32 %v430, %v496
        %v507 = vmul.f32 %v430, %v500
        %v508 = vmul.f32 %v430, %v504
        %v509 = vmul.f32 %v435, %v492
        %v510 = vmul.f32 %v435, %v496
        %v511 = vmul.f32 %v435, %v500
        %v512 = vmul.f32 %v435, %v504
        %v513 = vmul.f32 %v440, %v492
        %v514 = vmul.f32 %v440, %v496
        %v515 = vmul.f32 %v440, %v500
        %v516 = vmul.f32 %v440, %v504
        %v517 = vmul.f32 %v445, %v492
        %v518 = vmul.f32 %v445, %v496
        %v519 = vmul.f32 %v445, %v500
        %v520 = vmul.f32 %v445, %v504
        %v521 = vmul.f32 %v450, %v492
        %v522 = vmul.f32 %v450, %v496
        %v523 = vmul.f32 %v450, %v500
        %v524 = vmul.f32 %v450, %v504
        %v525 = vmul.f32 %v455, %v492
        %v526 = vmul.f32 %v455, %v496
        %v527 = vmul.f32 %v455, %v500
        %v528 = vmul.f32 %v455, %v504
        %v529 = vmul.f32 %v460, %v492
        %v530 = vmul.f32 %v460, %v496
        %v531 = vmul.f32 %v460, %v500
        %v532 = vmul.f32 %v460, %v504
        %v533 = vmul.f32 %v465, %v492
        %v534 = vmul.f32 %v465, %v496
        %v535 = vmul.f32 %v465, %v500
        %v536 = vmul.f32 %v465, %v504
        %537 = vset.pattern.permute.xlu0 1
        %538 = vperm.xlu0 %537, %v419
        %v539 = vpop.permute.xlu0 %538
        %541 = vset.pattern.permute.xlu0 1
        %542 = vperm.xlu0 %541, %v420
        %v543 = vpop.permute.xlu0 %542
        %545 = vset.pattern.permute.xlu0 1
        %546 = vperm.xlu0 %545, %v421
        %v547 = vpop.permute.xlu0 %546
        %549 = vset.pattern.permute.xlu0 1
        %550 = vperm.xlu0 %549, %v422
        %v551 = vpop.permute.xlu0 %550
        %553 = vset.pattern.permute.xlu0 1
        %554 = vperm.xlu0 %553, %v423
        %v555 = vpop.permute.xlu0 %554
        %557 = vset.pattern.permute.xlu0 1
        %558 = vperm.xlu0 %557, %v424
        %v559 = vpop.permute.xlu0 %558
        %561 = vset.pattern.permute.xlu0 1
        %562 = vperm.xlu0 %561, %v425
        %v563 = vpop.permute.xlu0 %562
        %565 = vset.pattern.permute.xlu0 1
        %566 = vperm.xlu0 %565, %v426
        %v567 = vpop.permute.xlu0 %566
        %v569 = vlaneseq
        %v570 = vshrl.u32 %v569, 7
        %v571 = vsub.s32 1, %v570
        %v572 = vrot.slane %v417, %v571
        %v573 = vlaneseq
        %v574 = vshrl.u32 %v573, 7
        %v575 = vsub.s32 5, %v574
        %v576 = vrot.slane %v417, %v575
        %v577 = vlaneseq
        %v578 = vshrl.u32 %v577, 7
        %v579 = vsub.s32 1, %v578
        %v580 = vrot.slane %v418, %v579
        %v581 = vlaneseq
        %v582 = vshrl.u32 %v581, 7
        %v583 = vsub.s32 5, %v582
        %v584 = vrot.slane %v418, %v583
        %v589 = vlaneseq
        %v590 = vshrl.u32 %v589, 7
        %v591 = vsub.s32 1, %v590
        %v592 = vrot.slane %v572, %v591
        %v593 = vlaneseq
        %v594 = vshrl.u32 %v593, 7
        %v595 = vsub.s32 1, %v594
        %v596 = vrot.slane %v576, %v595
        %v597 = vlaneseq
        %v598 = vshrl.u32 %v597, 7
        %v599 = vsub.s32 1, %v598
        %v600 = vrot.slane %v580, %v599
        %v601 = vlaneseq
        %v602 = vshrl.u32 %v601, 7
        %v603 = vsub.s32 1, %v602
        %v604 = vrot.slane %v584, %v603
        %v605 = vmul.f32 %v539, %v592
        %v606 = vmul.f32 %v539, %v596
        %v607 = vmul.f32 %v539, %v600
        %v608 = vmul.f32 %v539, %v604
        %v609 = vmul.f32 %v543, %v592
        %v610 = vmul.f32 %v543, %v596
        %v611 = vmul.f32 %v543, %v600
        %v612 = vmul.f32 %v543, %v604
        %v613 = vmul.f32 %v547, %v592
        %v614 = vmul.f32 %v547, %v596
        %v615 = vmul.f32 %v547, %v600
        %v616 = vmul.f32 %v547, %v604
        %v617 = vmul.f32 %v551, %v592
        %v618 = vmul.f32 %v551, %v596
        %v619 = vmul.f32 %v551, %v600
        %v620 = vmul.f32 %v551, %v604
        %v621 = vmul.f32 %v555, %v592
        %v622 = vmul.f32 %v555, %v596
        %v623 = vmul.f32 %v555, %v600
        %v624 = vmul.f32 %v555, %v604
        %v625 = vmul.f32 %v559, %v592
        %v626 = vmul.f32 %v559, %v596
        %v627 = vmul.f32 %v559, %v600
        %v628 = vmul.f32 %v559, %v604
        %v629 = vmul.f32 %v563, %v592
        %v630 = vmul.f32 %v563, %v596
        %v631 = vmul.f32 %v563, %v600
        %v632 = vmul.f32 %v563, %v604
        %v633 = vmul.f32 %v567, %v592
        %v634 = vmul.f32 %v567, %v596
        %v635 = vmul.f32 %v567, %v600
        %v636 = vmul.f32 %v567, %v604
        %v637 = vadd.f32 %v505, %v605
        %v638 = vadd.f32 %v506, %v606
        %v639 = vadd.f32 %v507, %v607
        %v640 = vadd.f32 %v508, %v608
        %v641 = vadd.f32 %v509, %v609
        %v642 = vadd.f32 %v510, %v610
        %v643 = vadd.f32 %v511, %v611
        %v644 = vadd.f32 %v512, %v612
        %v645 = vadd.f32 %v513, %v613
        %v646 = vadd.f32 %v514, %v614
        %v647 = vadd.f32 %v515, %v615
        %v648 = vadd.f32 %v516, %v616
        %v649 = vadd.f32 %v517, %v617
        %v650 = vadd.f32 %v518, %v618
        %v651 = vadd.f32 %v519, %v619
        %v652 = vadd.f32 %v520, %v620
        %v653 = vadd.f32 %v521, %v621
        %v654 = vadd.f32 %v522, %v622
        %v655 = vadd.f32 %v523, %v623
        %v656 = vadd.f32 %v524, %v624
        %v657 = vadd.f32 %v525, %v625
        %v658 = vadd.f32 %v526, %v626
        %v659 = vadd.f32 %v527, %v627
        %v660 = vadd.f32 %v528, %v628
        %v661 = vadd.f32 %v529, %v629
        %v662 = vadd.f32 %v530, %v630
        %v663 = vadd.f32 %v531, %v631
        %v664 = vadd.f32 %v532, %v632
        %v665 = vadd.f32 %v533, %v633
        %v666 = vadd.f32 %v534, %v634
        %v667 = vadd.f32 %v535, %v635
        %v668 = vadd.f32 %v536, %v636
        %669 = vset.pattern.permute.xlu0 2
        %670 = vperm.xlu0 %669, %v419
        %v671 = vpop.permute.xlu0 %670
        %673 = vset.pattern.permute.xlu0 2
        %674 = vperm.xlu0 %673, %v420
        %v675 = vpop.permute.xlu0 %674
        %677 = vset.pattern.permute.xlu0 2
        %678 = vperm.xlu0 %677, %v421
        %v679 = vpop.permute.xlu0 %678
        %681 = vset.pattern.permute.xlu0 2
        %682 = vperm.xlu0 %681, %v422
        %v683 = vpop.permute.xlu0 %682
        %685 = vset.pattern.permute.xlu0 2
        %686 = vperm.xlu0 %685, %v423
        %v687 = vpop.permute.xlu0 %686
        %689 = vset.pattern.permute.xlu0 2
        %690 = vperm.xlu0 %689, %v424
        %v691 = vpop.permute.xlu0 %690
        %693 = vset.pattern.permute.xlu0 2
        %694 = vperm.xlu0 %693, %v425
        %v695 = vpop.permute.xlu0 %694
        %697 = vset.pattern.permute.xlu0 2
        %698 = vperm.xlu0 %697, %v426
        %v699 = vpop.permute.xlu0 %698
        %v701 = vlaneseq
        %v702 = vshrl.u32 %v701, 7
        %v703 = vsub.s32 2, %v702
        %v704 = vrot.slane %v417, %v703
        %v705 = vlaneseq
        %v706 = vshrl.u32 %v705, 7
        %v707 = vsub.s32 6, %v706
        %v708 = vrot.slane %v417, %v707
        %v709 = vlaneseq
        %v710 = vshrl.u32 %v709, 7
        %v711 = vsub.s32 2, %v710
        %v712 = vrot.slane %v418, %v711
        %v713 = vlaneseq
        %v714 = vshrl.u32 %v713, 7
        %v715 = vsub.s32 6, %v714
        %v716 = vrot.slane %v418, %v715
        %v721 = vlaneseq
        %v722 = vshrl.u32 %v721, 7
        %v723 = vsub.s32 2, %v722
        %v724 = vrot.slane %v704, %v723
        %v725 = vlaneseq
        %v726 = vshrl.u32 %v725, 7
        %v727 = vsub.s32 2, %v726
        %v728 = vrot.slane %v708, %v727
        %v729 = vlaneseq
        %v730 = vshrl.u32 %v729, 7
        %v731 = vsub.s32 2, %v730
        %v732 = vrot.slane %v712, %v731
        %v733 = vlaneseq
        %v734 = vshrl.u32 %v733, 7
        %v735 = vsub.s32 2, %v734
        %v736 = vrot.slane %v716, %v735
        %v737 = vmul.f32 %v671, %v724
        %v738 = vmul.f32 %v671, %v728
        %v739 = vmul.f32 %v671, %v732
        %v740 = vmul.f32 %v671, %v736
        %v741 = vmul.f32 %v675, %v724
        %v742 = vmul.f32 %v675, %v728
        %v743 = vmul.f32 %v675, %v732
        %v744 = vmul.f32 %v675, %v736
        %v745 = vmul.f32 %v679, %v724
        %v746 = vmul.f32 %v679, %v728
        %v747 = vmul.f32 %v679, %v732
        %v748 = vmul.f32 %v679, %v736
        %v749 = vmul.f32 %v683, %v724
        %v750 = vmul.f32 %v683, %v728
        %v751 = vmul.f32 %v683, %v732
        %v752 = vmul.f32 %v683, %v736
        %v753 = vmul.f32 %v687, %v724
        %v754 = vmul.f32 %v687, %v728
        %v755 = vmul.f32 %v687, %v732
        %v756 = vmul.f32 %v687, %v736
        %v757 = vmul.f32 %v691, %v724
        %v758 = vmul.f32 %v691, %v728
        %v759 = vmul.f32 %v691, %v732
        %v760 = vmul.f32 %v691, %v736
        %v761 = vmul.f32 %v695, %v724
        %v762 = vmul.f32 %v695, %v728
        %v763 = vmul.f32 %v695, %v732
        %v764 = vmul.f32 %v695, %v736
        %v765 = vmul.f32 %v699, %v724
        %v766 = vmul.f32 %v699, %v728
        %v767 = vmul.f32 %v699, %v732
        %v768 = vmul.f32 %v699, %v736
        %v769 = vadd.f32 %v637, %v737
        %v770 = vadd.f32 %v638, %v738
        %v771 = vadd.f32 %v639, %v739
        %v772 = vadd.f32 %v640, %v740
        %v773 = vadd.f32 %v641, %v741
        %v774 = vadd.f32 %v642, %v742
        %v775 = vadd.f32 %v643, %v743
        %v776 = vadd.f32 %v644, %v744
        %v777 = vadd.f32 %v645, %v745
        %v778 = vadd.f32 %v646, %v746
        %v779 = vadd.f32 %v647, %v747
        %v780 = vadd.f32 %v648, %v748
        %v781 = vadd.f32 %v649, %v749
        %v782 = vadd.f32 %v650, %v750
        %v783 = vadd.f32 %v651, %v751
        %v784 = vadd.f32 %v652, %v752
        %v785 = vadd.f32 %v653, %v753
        %v786 = vadd.f32 %v654, %v754
        %v787 = vadd.f32 %v655, %v755
        %v788 = vadd.f32 %v656, %v756
        %v789 = vadd.f32 %v657, %v757
        %v790 = vadd.f32 %v658, %v758
        %v791 = vadd.f32 %v659, %v759
        %v792 = vadd.f32 %v660, %v760
        %v793 = vadd.f32 %v661, %v761
        %v794 = vadd.f32 %v662, %v762
        %v795 = vadd.f32 %v663, %v763
        %v796 = vadd.f32 %v664, %v764
        %v797 = vadd.f32 %v665, %v765
        %v798 = vadd.f32 %v666, %v766
        %v799 = vadd.f32 %v667, %v767
        %v800 = vadd.f32 %v668, %v768
        %v801 = vld [vmem:[%s2] sm:$0xff]
        %v802 = vld [vmem:[%s2 + $0x8] sm:$0xff]
        %v803 = vld [vmem:[%s2 + $0x10] sm:$0xff]
        %v804 = vld [vmem:[%s2 + $0x18] sm:$0xff]
        %v805 = vld [vmem:[%s2 + $0x20] sm:$0xff]
        %v806 = vld [vmem:[%s2 + $0x28] sm:$0xff]
        %v807 = vld [vmem:[%s2 + $0x30] sm:$0xff]
        %v808 = vld [vmem:[%s2 + $0x38] sm:$0xff]
        %810 = vset.pattern.permute.xlu0 0
        %811 = vperm.xlu0 %810, %v801
        %v812 = vpop.permute.xlu0 %811
        %815 = vset.pattern.permute.xlu0 0
        %816 = vperm.xlu0 %815, %v802
        %v817 = vpop.permute.xlu0 %816
        %820 = vset.pattern.permute.xlu0 0
        %821 = vperm.xlu0 %820, %v803
        %v822 = vpop.permute.xlu0 %821
        %825 = vset.pattern.permute.xlu0 0
        %826 = vperm.xlu0 %825, %v804
        %v827 = vpop.permute.xlu0 %826
        %830 = vset.pattern.permute.xlu0 0
        %831 = vperm.xlu0 %830, %v805
        %v832 = vpop.permute.xlu0 %831
        %835 = vset.pattern.permute.xlu0 0
        %836 = vperm.xlu0 %835, %v806
        %v837 = vpop.permute.xlu0 %836
        %840 = vset.pattern.permute.xlu0 0
        %841 = vperm.xlu0 %840, %v807
        %v842 = vpop.permute.xlu0 %841
        %845 = vset.pattern.permute.xlu0 0
        %846 = vperm.xlu0 %845, %v808
        %v847 = vpop.permute.xlu0 %846
        %v849 = vadd.f32 %v769, %v812
        %v850 = vadd.f32 %v770, %v812
        %v851 = vadd.f32 %v771, %v812
        %v852 = vadd.f32 %v772, %v812
        %v853 = vadd.f32 %v773, %v817
        %v854 = vadd.f32 %v774, %v817
        %v855 = vadd.f32 %v775, %v817
        %v856 = vadd.f32 %v776, %v817
        %v857 = vadd.f32 %v777, %v822
        %v858 = vadd.f32 %v778, %v822
        %v859 = vadd.f32 %v779, %v822
        %v860 = vadd.f32 %v780, %v822
        %v861 = vadd.f32 %v781, %v827
        %v862 = vadd.f32 %v782, %v827
        %v863 = vadd.f32 %v783, %v827
        %v864 = vadd.f32 %v784, %v827
        %v865 = vadd.f32 %v785, %v832
        %v866 = vadd.f32 %v786, %v832
        %v867 = vadd.f32 %v787, %v832
        %v868 = vadd.f32 %v788, %v832
        %v869 = vadd.f32 %v789, %v837
        %v870 = vadd.f32 %v790, %v837
        %v871 = vadd.f32 %v791, %v837
        %v872 = vadd.f32 %v792, %v837
        %v873 = vadd.f32 %v793, %v842
        %v874 = vadd.f32 %v794, %v842
        %v875 = vadd.f32 %v795, %v842
        %v876 = vadd.f32 %v796, %v842
        %v877 = vadd.f32 %v797, %v847
        %v878 = vadd.f32 %v798, %v847
        %v879 = vadd.f32 %v799, %v847
        %v880 = vadd.f32 %v800, %v847
        %v881 = vmax.f32 %v849, 0.0
        %v882 = vmax.f32 %v850, 0.0
        %v883 = vmax.f32 %v851, 0.0
        %v884 = vmax.f32 %v852, 0.0
        %v885 = vmax.f32 %v853, 0.0
        %v886 = vmax.f32 %v854, 0.0
        %v887 = vmax.f32 %v855, 0.0
        %v888 = vmax.f32 %v856, 0.0
        %v889 = vmax.f32 %v857, 0.0
        %v890 = vmax.f32 %v858, 0.0
        %v891 = vmax.f32 %v859, 0.0
        %v892 = vmax.f32 %v860, 0.0
        %v893 = vmax.f32 %v861, 0.0
        %v894 = vmax.f32 %v862, 0.0
        %v895 = vmax.f32 %v863, 0.0
        %v896 = vmax.f32 %v864, 0.0
        %v897 = vmax.f32 %v865, 0.0
        %v898 = vmax.f32 %v866, 0.0
        %v899 = vmax.f32 %v867, 0.0
        %v900 = vmax.f32 %v868, 0.0
        %v901 = vmax.f32 %v869, 0.0
        %v902 = vmax.f32 %v870, 0.0
        %v903 = vmax.f32 %v871, 0.0
        %v904 = vmax.f32 %v872, 0.0
        %v905 = vmax.f32 %v873, 0.0
        %v906 = vmax.f32 %v874, 0.0
        %v907 = vmax.f32 %v875, 0.0
        %v908 = vmax.f32 %v876, 0.0
        %v909 = vmax.f32 %v877, 0.0
        %v910 = vmax.f32 %v878, 0.0
        %v911 = vmax.f32 %v879, 0.0
        %v912 = vmax.f32 %v880, 0.0
        %v913 = vld [vmem:[%s3] sm:$0xf]
        %v914 = vld [vmem:[%s3 + $0x4] sm:$0xf]
        %v915 = vld [vmem:[%s3 + $0x8] sm:$0xf]
        %v916 = vld [vmem:[%s3 + $0xc] sm:$0xf]
        %v917 = vld [vmem:[%s3 + $0x10] sm:$0xf]
        %v918 = vld [vmem:[%s3 + $0x14] sm:$0xf]
        %v919 = vld [vmem:[%s3 + $0x18] sm:$0xf]
        %v920 = vld [vmem:[%s3 + $0x1c] sm:$0xf]
        %v921 = vpack.c.bf16 %v885, %v881
        %v922 = vpack.c.bf16 %v886, %v882
        %v923 = vpack.c.bf16 %v887, %v883
        %v924 = vpack.c.bf16 %v888, %v884
        %v925 = vpack.c.bf16 %v893, %v889
        %v926 = vpack.c.bf16 %v894, %v890
        %v927 = vpack.c.bf16 %v895, %v891
        %v928 = vpack.c.bf16 %v896, %v892
        %v929 = vpack.c.bf16 %v901, %v897
        %v930 = vpack.c.bf16 %v902, %v898
        %v931 = vpack.c.bf16 %v903, %v899
        %v932 = vpack.c.bf16 %v904, %v900
        %v933 = vpack.c.bf16 %v909, %v905
        %v934 = vpack.c.bf16 %v910, %v906
        %v935 = vpack.c.bf16 %v911, %v907
        %v936 = vpack.c.bf16 %v912, %v908
        %v937 = vld [vmem:[%s4] sm:$0xff]
        %v938 = vld [vmem:[%s4 + $0x8] sm:$0xff]
        %v939 = vld [vmem:[%s4 + $0x10] sm:$0xff]
        %v940 = vld [vmem:[%s4 + $0x18] sm:$0xff]
        %v941 = vld [vmem:[%s4 + $0x20] sm:$0xff]
        %v942 = vld [vmem:[%s4 + $0x28] sm:$0xff]
        %v943 = vld [vmem:[%s4 + $0x30] sm:$0xff]
        %v944 = vld [vmem:[%s4 + $0x38] sm:$0xff]
        %946 = vset.pattern.permute.xlu0 0
        %947 = vperm.xlu0 %946, %v937
        %v948 = vpop.permute.xlu0 %947
        %951 = vset.pattern.permute.xlu0 0
        %952 = vperm.xlu0 %951, %v938
        %v953 = vpop.permute.xlu0 %952
        %956 = vset.pattern.permute.xlu0 0
        %957 = vperm.xlu0 %956, %v939
        %v958 = vpop.permute.xlu0 %957
        %961 = vset.pattern.permute.xlu0 0
        %962 = vperm.xlu0 %961, %v940
        %v963 = vpop.permute.xlu0 %962
        %966 = vset.pattern.permute.xlu0 0
        %967 = vperm.xlu0 %966, %v941
        %v968 = vpop.permute.xlu0 %967
        %971 = vset.pattern.permute.xlu0 0
        %972 = vperm.xlu0 %971, %v942
        %v973 = vpop.permute.xlu0 %972
        %976 = vset.pattern.permute.xlu0 0
        %977 = vperm.xlu0 %976, %v943
        %v978 = vpop.permute.xlu0 %977
        %981 = vset.pattern.permute.xlu0 0
        %982 = vperm.xlu0 %981, %v944
        %v983 = vpop.permute.xlu0 %982
        %v993 = vunpack.c.l.b16 %v913
        %v994 = vunpack.c.l.b16 %v914
        %v995 = vunpack.c.l.b16 %v915
        %v996 = vunpack.c.l.b16 %v916
        %v997 = vunpack.c.l.b16 %v917
        %v998 = vunpack.c.l.b16 %v918
        %v999 = vunpack.c.l.b16 %v919
        %v1000 = vunpack.c.l.b16 %v920
        %v1001 = vpack.c.b16 %v994, %v993
        %v1002 = vpack.c.b16 %v996, %v995
        %v1003 = vpack.c.b16 %v998, %v997
        %v1004 = vpack.c.b16 %v1000, %v999
        %vm1005 = vcmask 523264
        %v1007 = vsel %vm1005, %v1001, 0
        %v1010 = vsel %vm1005, %v1002, 0
        %v1013 = vsel %vm1005, %v1003, 0
        %v1016 = vsel %vm1005, %v1004, 0
        %1018 = vmatprep.subr.bf16.mxu0 %v922
        %1019 = vmatpush1.bf16.msra.mxu0 %v921
        %1020 = vmatprep.subr.bf16.mxu0 %v926
        %1021 = vmatpush1.bf16.msra.mxu0 %v925
        %1022 = vmatprep.subr.bf16.mxu0 %v930
        %1023 = vmatpush1.bf16.msra.mxu0 %v929
        %1024 = vmatprep.subr.bf16.mxu0 %v934
        %1025 = vmatpush1.bf16.msra.mxu0 %v933
        %1026 = vmatprep.subr.bf16.mxu0 0
        %1027 = vmatpush1.bf16.msra.mxu0 0
        %1028 = vmatprep.subr.bf16.mxu0 0
        %1029 = vmatpush1.bf16.msra.mxu0 0
        %1030 = vmatprep.subr.bf16.mxu0 0
        %1031 = vmatpush1.bf16.msra.mxu0 0
        %1032 = vmatprep.subr.bf16.mxu0 0
        %1033 = vmatpush1.bf16.msra.mxu0 0
        %1034 = vmatprep.subr.bf16.mxu0 0
        %1035 = vmatpush1.bf16.msra.mxu0 0
        %1036 = vmatprep.subr.bf16.mxu0 0
        %1037 = vmatpush1.bf16.msra.mxu0 0
        %1038 = vmatprep.subr.bf16.mxu0 0
        %1039 = vmatpush1.bf16.msra.mxu0 0
        %1040 = vmatprep.subr.bf16.mxu0 0
        %1041 = vmatpush1.bf16.msra.mxu0 0
        %1042 = vmatprep.subr.bf16.mxu0 0
        %1043 = vmatpush1.bf16.msra.mxu0 0
        %1044 = vmatprep.subr.bf16.mxu0 0
        %1045 = vmatpush1.bf16.msra.mxu0 0
        %1046 = vmatprep.subr.bf16.mxu0 0
        %1047 = vmatpush1.bf16.msra.mxu0 0
        %1048 = vmatprep.subr.bf16.mxu0 0
        %1049 = vmatpush1.bf16.msra.mxu0 0
        %1050 = vmatprep.mubr.bf16.mxu0 0
        %1051 = vmatmul.mubr.bf16.gmra.mrb[0].mxu0 %v1007
        %v1052 = vpop.f32.mrb[0].mxu0
        %v1053 = vadd.f32 %v948, %v1052
        %v1054 = vpop.f32.mrb[0].mxu0
        %v1055 = vadd.f32 %v948, %v1054
        %v1056 = vpop.f32.mrb[0].mxu0
        %v1057 = vadd.f32 %v953, %v1056
        %v1058 = vpop.f32.mrb[0].mxu0
        %v1059 = vadd.f32 %v953, %v1058
        %1060 = vmatprep.mubr.bf16.mxu0 0
        %1061 = vmatmul.mubr.bf16.gmra.mrb[0].mxu0 %v1010
        %v1062 = vpop.f32.mrb[0].mxu0
        %v1063 = vadd.f32 %v958, %v1062
        %v1064 = vpop.f32.mrb[0].mxu0
        %v1065 = vadd.f32 %v958, %v1064
        %v1066 = vpop.f32.mrb[0].mxu0
        %v1067 = vadd.f32 %v963, %v1066
        %v1068 = vpop.f32.mrb[0].mxu0
        %v1069 = vadd.f32 %v963, %v1068
        %1070 = vmatprep.mubr.bf16.mxu0 0
        %1071 = vmatmul.mubr.bf16.gmra.mrb[0].mxu0 %v1013
        %v1072 = vpop.f32.mrb[0].mxu0
        %v1073 = vadd.f32 %v968, %v1072
        %v1074 = vpop.f32.mrb[0].mxu0
        %v1075 = vadd.f32 %v968, %v1074
        %v1076 = vpop.f32.mrb[0].mxu0
        %v1077 = vadd.f32 %v973, %v1076
        %v1078 = vpop.f32.mrb[0].mxu0
        %v1079 = vadd.f32 %v973, %v1078
        %1080 = vmatprep.mubr.bf16.mxu0 0
        %1081 = vmatmul.mubr.bf16.gmra.mrb[0].mxu0 %v1016
        %v1082 = vpop.f32.mrb[0].mxu0
        %v1083 = vadd.f32 %v978, %v1082
        %v1084 = vpop.f32.mrb[0].mxu0
        %v1085 = vadd.f32 %v978, %v1084
        %v1086 = vpop.f32.mrb[0].mxu0
        %v1087 = vadd.f32 %v983, %v1086
        %v1088 = vpop.f32.mrb[0].mxu0
        %v1089 = vadd.f32 %v983, %v1088
        %1090 = vdwg.mxu0
        %1091 = vmatprep.subr.bf16.mxu0 %v924
        %1092 = vmatpush1.bf16.msra.mxu0 %v923
        %1093 = vmatprep.subr.bf16.mxu0 %v928
        %1094 = vmatpush1.bf16.msra.mxu0 %v927
        %1095 = vmatprep.subr.bf16.mxu0 %v932
        %1096 = vmatpush1.bf16.msra.mxu0 %v931
        %1097 = vmatprep.subr.bf16.mxu0 %v936
        %1098 = vmatpush1.bf16.msra.mxu0 %v935
        %1099 = vmatprep.subr.bf16.mxu0 0
        %1100 = vmatpush1.bf16.msra.mxu0 0
        %1101 = vmatprep.subr.bf16.mxu0 0
        %1102 = vmatpush1.bf16.msra.mxu0 0
        %1103 = vmatprep.subr.bf16.mxu0 0
        %1104 = vmatpush1.bf16.msra.mxu0 0
        %1105 = vmatprep.subr.bf16.mxu0 0
        %1106 = vmatpush1.bf16.msra.mxu0 0
        %1107 = vmatprep.subr.bf16.mxu0 0
        %1108 = vmatpush1.bf16.msra.mxu0 0
        %1109 = vmatprep.subr.bf16.mxu0 0
        %1110 = vmatpush1.bf16.msra.mxu0 0
        %1111 = vmatprep.subr.bf16.mxu0 0
        %1112 = vmatpush1.bf16.msra.mxu0 0
        %1113 = vmatprep.subr.bf16.mxu0 0
        %1114 = vmatpush1.bf16.msra.mxu0 0
        %1115 = vmatprep.subr.bf16.mxu0 0
        %1116 = vmatpush1.bf16.msra.mxu0 0
        %1117 = vmatprep.subr.bf16.mxu0 0
        %1118 = vmatpush1.bf16.msra.mxu0 0
        %1119 = vmatprep.subr.bf16.mxu0 0
        %1120 = vmatpush1.bf16.msra.mxu0 0
        %1121 = vmatprep.subr.bf16.mxu0 0
        %1122 = vmatpush1.bf16.msra.mxu0 0
        %1123 = vmatprep.mubr.bf16.mxu0 0
        %1124 = vmatmul.mubr.bf16.gmra.mrb[0].mxu0 %v1007
        %v1125 = vpop.f32.mrb[0].mxu0
        %v1126 = vadd.f32 %v948, %v1125
        %v1127 = vpop.f32.mrb[0].mxu0
        %v1128 = vadd.f32 %v948, %v1127
        %v1129 = vpop.f32.mrb[0].mxu0
        %v1130 = vadd.f32 %v953, %v1129
        %v1131 = vpop.f32.mrb[0].mxu0
        %v1132 = vadd.f32 %v953, %v1131
        %1133 = vmatprep.mubr.bf16.mxu0 0
        %1134 = vmatmul.mubr.bf16.gmra.mrb[0].mxu0 %v1010
        %v1135 = vpop.f32.mrb[0].mxu0
        %v1136 = vadd.f32 %v958, %v1135
        %v1137 = vpop.f32.mrb[0].mxu0
        %v1138 = vadd.f32 %v958, %v1137
        %v1139 = vpop.f32.mrb[0].mxu0
        %v1140 = vadd.f32 %v963, %v1139
        %v1141 = vpop.f32.mrb[0].mxu0
        %v1142 = vadd.f32 %v963, %v1141
        %1143 = vmatprep.mubr.bf16.mxu0 0
        %1144 = vmatmul.mubr.bf16.gmra.mrb[0].mxu0 %v1013
        %v1145 = vpop.f32.mrb[0].mxu0
        %v1146 = vadd.f32 %v968, %v1145
        %v1147 = vpop.f32.mrb[0].mxu0
        %v1148 = vadd.f32 %v968, %v1147
        %v1149 = vpop.f32.mrb[0].mxu0
        %v1150 = vadd.f32 %v973, %v1149
        %v1151 = vpop.f32.mrb[0].mxu0
        %v1152 = vadd.f32 %v973, %v1151
        %1153 = vmatprep.mubr.bf16.mxu0 0
        %1154 = vmatmul.mubr.bf16.gmra.mrb[0].mxu0 %v1016
        %v1155 = vpop.f32.mrb[0].mxu0
        %v1156 = vadd.f32 %v978, %v1155
        %v1157 = vpop.f32.mrb[0].mxu0
        %v1158 = vadd.f32 %v978, %v1157
        %v1159 = vpop.f32.mrb[0].mxu0
        %v1160 = vadd.f32 %v983, %v1159
        %v1161 = vpop.f32.mrb[0].mxu0
        %v1162 = vadd.f32 %v983, %v1161
        %1163 = vdwg.mxu0
        %v1164 = vmax.f32 %v1053, 0.0
        %v1165 = vmax.f32 %v1055, 0.0
        %v1166 = vmax.f32 %v1126, 0.0
        %v1167 = vmax.f32 %v1128, 0.0
        %v1168 = vmax.f32 %v1057, 0.0
        %v1169 = vmax.f32 %v1059, 0.0
        %v1170 = vmax.f32 %v1130, 0.0
        %v1171 = vmax.f32 %v1132, 0.0
        %v1172 = vmax.f32 %v1063, 0.0
        %v1173 = vmax.f32 %v1065, 0.0
        %v1174 = vmax.f32 %v1136, 0.0
        %v1175 = vmax.f32 %v1138, 0.0
        %v1176 = vmax.f32 %v1067, 0.0
        %v1177 = vmax.f32 %v1069, 0.0
        %v1178 = vmax.f32 %v1140, 0.0
        %v1179 = vmax.f32 %v1142, 0.0
        %v1180 = vmax.f32 %v1073, 0.0
        %v1181 = vmax.f32 %v1075, 0.0
        %v1182 = vmax.f32 %v1146, 0.0
        %v1183 = vmax.f32 %v1148, 0.0
        %v1184 = vmax.f32 %v1077, 0.0
        %v1185 = vmax.f32 %v1079, 0.0
        %v1186 = vmax.f32 %v1150, 0.0
        %v1187 = vmax.f32 %v1152, 0.0
        %v1188 = vmax.f32 %v1083, 0.0
        %v1189 = vmax.f32 %v1085, 0.0
        %v1190 = vmax.f32 %v1156, 0.0
        %v1191 = vmax.f32 %v1158, 0.0
        %v1192 = vmax.f32 %v1087, 0.0
        %v1193 = vmax.f32 %v1089, 0.0
        %v1194 = vmax.f32 %v1160, 0.0
        %v1195 = vmax.f32 %v1162, 0.0
        %v1196 = vld [vmem:[%s5] sm:$0xf]
        %v1197 = vld [vmem:[%s5 + $0x4] sm:$0xf]
        %v1198 = vld [vmem:[%s5 + $0x8] sm:$0xf]
        %v1199 = vld [vmem:[%s5 + $0xc] sm:$0xf]
        %v1200 = vld [vmem:[%s5 + $0x10] sm:$0xf]
        %v1201 = vld [vmem:[%s5 + $0x14] sm:$0xf]
        %v1202 = vld [vmem:[%s5 + $0x18] sm:$0xf]
        %v1203 = vld [vmem:[%s5 + $0x1c] sm:$0xf]
        %v1204 = vpack.c.bf16 %v1168, %v1164
        %v1205 = vpack.c.bf16 %v1169, %v1165
        %v1206 = vpack.c.bf16 %v1170, %v1166
        %v1207 = vpack.c.bf16 %v1171, %v1167
        %v1208 = vpack.c.bf16 %v1176, %v1172
        %v1209 = vpack.c.bf16 %v1177, %v1173
        %v1210 = vpack.c.bf16 %v1178, %v1174
        %v1211 = vpack.c.bf16 %v1179, %v1175
        %v1212 = vpack.c.bf16 %v1184, %v1180
        %v1213 = vpack.c.bf16 %v1185, %v1181
        %v1214 = vpack.c.bf16 %v1186, %v1182
        %v1215 = vpack.c.bf16 %v1187, %v1183
        %v1216 = vpack.c.bf16 %v1192, %v1188
        %v1217 = vpack.c.bf16 %v1193, %v1189
        %v1218 = vpack.c.bf16 %v1194, %v1190
        %v1219 = vpack.c.bf16 %v1195, %v1191
        %v1220 = vld [vmem:[%s6] sm:$0xff]
        %v1221 = vld [vmem:[%s6 + $0x8] sm:$0xff]
        %v1222 = vld [vmem:[%s6 + $0x10] sm:$0xff]
        %v1223 = vld [vmem:[%s6 + $0x18] sm:$0xff]
        %v1224 = vld [vmem:[%s6 + $0x20] sm:$0xff]
        %v1225 = vld [vmem:[%s6 + $0x28] sm:$0xff]
        %v1226 = vld [vmem:[%s6 + $0x30] sm:$0xff]
        %v1227 = vld [vmem:[%s6 + $0x38] sm:$0xff]
        %1229 = vset.pattern.permute.xlu0 0
        %1230 = vperm.xlu0 %1229, %v1220
        %v1231 = vpop.permute.xlu0 %1230
        %1234 = vset.pattern.permute.xlu0 0
        %1235 = vperm.xlu0 %1234, %v1221
        %v1236 = vpop.permute.xlu0 %1235
        %1239 = vset.pattern.permute.xlu0 0
        %1240 = vperm.xlu0 %1239, %v1222
        %v1241 = vpop.permute.xlu0 %1240
        %1244 = vset.pattern.permute.xlu0 0
        %1245 = vperm.xlu0 %1244, %v1223
        %v1246 = vpop.permute.xlu0 %1245
        %1249 = vset.pattern.permute.xlu0 0
        %1250 = vperm.xlu0 %1249, %v1224
        %v1251 = vpop.permute.xlu0 %1250
        %1254 = vset.pattern.permute.xlu0 0
        %1255 = vperm.xlu0 %1254, %v1225
        %v1256 = vpop.permute.xlu0 %1255
        %1259 = vset.pattern.permute.xlu0 0
        %1260 = vperm.xlu0 %1259, %v1226
        %v1261 = vpop.permute.xlu0 %1260
        %1264 = vset.pattern.permute.xlu0 0
        %1265 = vperm.xlu0 %1264, %v1227
        %v1266 = vpop.permute.xlu0 %1265
        %v1276 = vunpack.c.l.b16 %v1196
        %v1277 = vunpack.c.l.b16 %v1197
        %v1278 = vunpack.c.l.b16 %v1198
        %v1279 = vunpack.c.l.b16 %v1199
        %v1280 = vunpack.c.l.b16 %v1200
        %v1281 = vunpack.c.l.b16 %v1201
        %v1282 = vunpack.c.l.b16 %v1202
        %v1283 = vunpack.c.l.b16 %v1203
        %v1284 = vpack.c.b16 %v1277, %v1276
        %v1285 = vpack.c.b16 %v1279, %v1278
        %v1286 = vpack.c.b16 %v1281, %v1280
        %v1287 = vpack.c.b16 %v1283, %v1282
        %v1289 = vsel %vm1005, %v1284, 0
        %v1292 = vsel %vm1005, %v1285, 0
        %v1295 = vsel %vm1005, %v1286, 0
        %v1298 = vsel %vm1005, %v1287, 0
        %1300 = vmatprep.subr.bf16.mxu0 %v1205
        %1301 = vmatpush1.bf16.msra.mxu0 %v1204
        %1302 = vmatprep.subr.bf16.mxu0 %v1209
        %1303 = vmatpush1.bf16.msra.mxu0 %v1208
        %1304 = vmatprep.subr.bf16.mxu0 %v1213
        %1305 = vmatpush1.bf16.msra.mxu0 %v1212
        %1306 = vmatprep.subr.bf16.mxu0 %v1217
        %1307 = vmatpush1.bf16.msra.mxu0 %v1216
        %1308 = vmatprep.subr.bf16.mxu0 0
        %1309 = vmatpush1.bf16.msra.mxu0 0
        %1310 = vmatprep.subr.bf16.mxu0 0
        %1311 = vmatpush1.bf16.msra.mxu0 0
        %1312 = vmatprep.subr.bf16.mxu0 0
        %1313 = vmatpush1.bf16.msra.mxu0 0
        %1314 = vmatprep.subr.bf16.mxu0 0
        %1315 = vmatpush1.bf16.msra.mxu0 0
        %1316 = vmatprep.subr.bf16.mxu0 0
        %1317 = vmatpush1.bf16.msra.mxu0 0
        %1318 = vmatprep.subr.bf16.mxu0 0
        %1319 = vmatpush1.bf16.msra.mxu0 0
        %1320 = vmatprep.subr.bf16.mxu0 0
        %1321 = vmatpush1.bf16.msra.mxu0 0
        %1322 = vmatprep.subr.bf16.mxu0 0
        %1323 = vmatpush1.bf16.msra.mxu0 0
        %1324 = vmatprep.subr.bf16.mxu0 0
        %1325 = vmatpush1.bf16.msra.mxu0 0
        %1326 = vmatprep.subr.bf16.mxu0 0
        %1327 = vmatpush1.bf16.msra.mxu0 0
        %1328 = vmatprep.subr.bf16.mxu0 0
        %1329 = vmatpush1.bf16.msra.mxu0 0
        %1330 = vmatprep.subr.bf16.mxu0 0
        %1331 = vmatpush1.bf16.msra.mxu0 0
        %1332 = vmatprep.mubr.bf16.mxu0 0
        %1333 = vmatmul.mubr.bf16.gmra.mrb[0].mxu0 %v1289
        %v1334 = vpop.f32.mrb[0].mxu0
        %v1335 = vadd.f32 %v1231, %v1334
        %v1336 = vpop.f32.mrb[0].mxu0
        %v1337 = vadd.f32 %v1231, %v1336
        %v1338 = vpop.f32.mrb[0].mxu0
        %v1339 = vadd.f32 %v1236, %v1338
        %v1340 = vpop.f32.mrb[0].mxu0
        %v1341 = vadd.f32 %v1236, %v1340
        %1342 = vmatprep.mubr.bf16.mxu0 0
        %1343 = vmatmul.mubr.bf16.gmra.mrb[0].mxu0 %v1292
        %v1344 = vpop.f32.mrb[0].mxu0
        %v1345 = vadd.f32 %v1241, %v1344
        %v1346 = vpop.f32.mrb[0].mxu0
        %v1347 = vadd.f32 %v1241, %v1346
        %v1348 = vpop.f32.mrb[0].mxu0
        %v1349 = vadd.f32 %v1246, %v1348
        %v1350 = vpop.f32.mrb[0].mxu0
        %v1351 = vadd.f32 %v1246, %v1350
        %1352 = vmatprep.mubr.bf16.mxu0 0
        %1353 = vmatmul.mubr.bf16.gmra.mrb[0].mxu0 %v1295
        %v1354 = vpop.f32.mrb[0].mxu0
        %v1355 = vadd.f32 %v1251, %v1354
        %v1356 = vpop.f32.mrb[0].mxu0
        %v1357 = vadd.f32 %v1251, %v1356
        %v1358 = vpop.f32.mrb[0].mxu0
        %v1359 = vadd.f32 %v1256, %v1358
        %v1360 = vpop.f32.mrb[0].mxu0
        %v1361 = vadd.f32 %v1256, %v1360
        %1362 = vmatprep.mubr.bf16.mxu0 0
        %1363 = vmatmul.mubr.bf16.gmra.mrb[0].mxu0 %v1298
        %v1364 = vpop.f32.mrb[0].mxu0
        %v1365 = vadd.f32 %v1261, %v1364
        %v1366 = vpop.f32.mrb[0].mxu0
        %v1367 = vadd.f32 %v1261, %v1366
        %v1368 = vpop.f32.mrb[0].mxu0
        %v1369 = vadd.f32 %v1266, %v1368
        %v1370 = vpop.f32.mrb[0].mxu0
        %v1371 = vadd.f32 %v1266, %v1370
        %1372 = vdwg.mxu0
        %1373 = vmatprep.subr.bf16.mxu0 %v1207
        %1374 = vmatpush1.bf16.msra.mxu0 %v1206
        %1375 = vmatprep.subr.bf16.mxu0 %v1211
        %1376 = vmatpush1.bf16.msra.mxu0 %v1210
        %1377 = vmatprep.subr.bf16.mxu0 %v1215
        %1378 = vmatpush1.bf16.msra.mxu0 %v1214
        %1379 = vmatprep.subr.bf16.mxu0 %v1219
        %1380 = vmatpush1.bf16.msra.mxu0 %v1218
        %1381 = vmatprep.subr.bf16.mxu0 0
        %1382 = vmatpush1.bf16.msra.mxu0 0
        %1383 = vmatprep.subr.bf16.mxu0 0
        %1384 = vmatpush1.bf16.msra.mxu0 0
        %1385 = vmatprep.subr.bf16.mxu0 0
        %1386 = vmatpush1.bf16.msra.mxu0 0
        %1387 = vmatprep.subr.bf16.mxu0 0
        %1388 = vmatpush1.bf16.msra.mxu0 0
        %1389 = vmatprep.subr.bf16.mxu0 0
        %1390 = vmatpush1.bf16.msra.mxu0 0
        %1391 = vmatprep.subr.bf16.mxu0 0
        %1392 = vmatpush1.bf16.msra.mxu0 0
        %1393 = vmatprep.subr.bf16.mxu0 0
        %1394 = vmatpush1.bf16.msra.mxu0 0
        %1395 = vmatprep.subr.bf16.mxu0 0
        %1396 = vmatpush1.bf16.msra.mxu0 0
        %1397 = vmatprep.subr.bf16.mxu0 0
        %1398 = vmatpush1.bf16.msra.mxu0 0
        %1399 = vmatprep.subr.bf16.mxu0 0
        %1400 = vmatpush1.bf16.msra.mxu0 0
        %1401 = vmatprep.subr.bf16.mxu0 0
        %1402 = vmatpush1.bf16.msra.mxu0 0
        %1403 = vmatprep.subr.bf16.mxu0 0
        %1404 = vmatpush1.bf16.msra.mxu0 0
        %1405 = vmatprep.mubr.bf16.mxu0 0
        %1406 = vmatmul.mubr.bf16.gmra.mrb[0].mxu0 %v1289
        %v1407 = vpop.f32.mrb[0].mxu0
        %v1408 = vadd.f32 %v1231, %v1407
        %v1409 = vpop.f32.mrb[0].mxu0
        %v1410 = vadd.f32 %v1231, %v1409
        %v1411 = vpop.f32.mrb[0].mxu0
        %v1412 = vadd.f32 %v1236, %v1411
        %v1413 = vpop.f32.mrb[0].mxu0
        %v1414 = vadd.f32 %v1236, %v1413
        %1415 = vmatprep.mubr.bf16.mxu0 0
        %1416 = vmatmul.mubr.bf16.gmra.mrb[0].mxu0 %v1292
        %v1417 = vpop.f32.mrb[0].mxu0
        %v1418 = vadd.f32 %v1241, %v1417
        %v1419 = vpop.f32.mrb[0].mxu0
        %v1420 = vadd.f32 %v1241, %v1419
        %v1421 = vpop.f32.mrb[0].mxu0
        %v1422 = vadd.f32 %v1246, %v1421
        %v1423 = vpop.f32.mrb[0].mxu0
        %v1424 = vadd.f32 %v1246, %v1423
        %1425 = vmatprep.mubr.bf16.mxu0 0
        %1426 = vmatmul.mubr.bf16.gmra.mrb[0].mxu0 %v1295
        %v1427 = vpop.f32.mrb[0].mxu0
        %v1428 = vadd.f32 %v1251, %v1427
        %v1429 = vpop.f32.mrb[0].mxu0
        %v1430 = vadd.f32 %v1251, %v1429
        %v1431 = vpop.f32.mrb[0].mxu0
        %v1432 = vadd.f32 %v1256, %v1431
        %v1433 = vpop.f32.mrb[0].mxu0
        %v1434 = vadd.f32 %v1256, %v1433
        %1435 = vmatprep.mubr.bf16.mxu0 0
        %1436 = vmatmul.mubr.bf16.gmra.mrb[0].mxu0 %v1298
        %v1437 = vpop.f32.mrb[0].mxu0
        %v1438 = vadd.f32 %v1261, %v1437
        %v1439 = vpop.f32.mrb[0].mxu0
        %v1440 = vadd.f32 %v1261, %v1439
        %v1441 = vpop.f32.mrb[0].mxu0
        %v1442 = vadd.f32 %v1266, %v1441
        %v1443 = vpop.f32.mrb[0].mxu0
        %v1444 = vadd.f32 %v1266, %v1443
        %1445 = vdwg.mxu0
        %v1446 = vmax.f32 %v1335, 0.0
        %v1447 = vmax.f32 %v1337, 0.0
        %v1448 = vmax.f32 %v1408, 0.0
        %v1449 = vmax.f32 %v1410, 0.0
        %v1450 = vmax.f32 %v1339, 0.0
        %v1451 = vmax.f32 %v1341, 0.0
        %v1452 = vmax.f32 %v1412, 0.0
        %v1453 = vmax.f32 %v1414, 0.0
        %v1454 = vmax.f32 %v1345, 0.0
        %v1455 = vmax.f32 %v1347, 0.0
        %v1456 = vmax.f32 %v1418, 0.0
        %v1457 = vmax.f32 %v1420, 0.0
        %v1458 = vmax.f32 %v1349, 0.0
        %v1459 = vmax.f32 %v1351, 0.0
        %v1460 = vmax.f32 %v1422, 0.0
        %v1461 = vmax.f32 %v1424, 0.0
        %v1462 = vmax.f32 %v1355, 0.0
        %v1463 = vmax.f32 %v1357, 0.0
        %v1464 = vmax.f32 %v1428, 0.0
        %v1465 = vmax.f32 %v1430, 0.0
        %v1466 = vmax.f32 %v1359, 0.0
        %v1467 = vmax.f32 %v1361, 0.0
        %v1468 = vmax.f32 %v1432, 0.0
        %v1469 = vmax.f32 %v1434, 0.0
        %v1470 = vmax.f32 %v1365, 0.0
        %v1471 = vmax.f32 %v1367, 0.0
        %v1472 = vmax.f32 %v1438, 0.0
        %v1473 = vmax.f32 %v1440, 0.0
        %v1474 = vmax.f32 %v1369, 0.0
        %v1475 = vmax.f32 %v1371, 0.0
        %v1476 = vmax.f32 %v1442, 0.0
        %v1477 = vmax.f32 %v1444, 0.0
        %v1478 = vld [vmem:[%s7] sm:$0xf]
        %v1479 = vld [vmem:[%s7 + $0x4] sm:$0xf]
        %v1480 = vld [vmem:[%s7 + $0x8] sm:$0xf]
        %v1481 = vld [vmem:[%s7 + $0xc] sm:$0xf]
        %v1482 = vld [vmem:[%s7 + $0x10] sm:$0xf]
        %v1483 = vld [vmem:[%s7 + $0x14] sm:$0xf]
        %v1484 = vld [vmem:[%s7 + $0x18] sm:$0xf]
        %v1485 = vld [vmem:[%s7 + $0x1c] sm:$0xf]
        %v1486 = vld [vmem:[%s7 + $0x20] sm:$0xf]
        %v1487 = vld [vmem:[%s7 + $0x24] sm:$0xf]
        %v1488 = vld [vmem:[%s7 + $0x28] sm:$0xf]
        %v1489 = vld [vmem:[%s7 + $0x2c] sm:$0xf]
        %v1490 = vld [vmem:[%s7 + $0x30] sm:$0xf]
        %v1491 = vld [vmem:[%s7 + $0x34] sm:$0xf]
        %v1492 = vld [vmem:[%s7 + $0x38] sm:$0xf]
        %v1493 = vld [vmem:[%s7 + $0x3c] sm:$0xf]
        %v1494 = vpack.c.bf16 %v1450, %v1446
        %v1495 = vpack.c.bf16 %v1451, %v1447
        %v1496 = vpack.c.bf16 %v1452, %v1448
        %v1497 = vpack.c.bf16 %v1453, %v1449
        %v1498 = vpack.c.bf16 %v1458, %v1454
        %v1499 = vpack.c.bf16 %v1459, %v1455
        %v1500 = vpack.c.bf16 %v1460, %v1456
        %v1501 = vpack.c.bf16 %v1461, %v1457
        %v1502 = vpack.c.bf16 %v1466, %v1462
        %v1503 = vpack.c.bf16 %v1467, %v1463
        %v1504 = vpack.c.bf16 %v1468, %v1464
        %v1505 = vpack.c.bf16 %v1469, %v1465
        %v1506 = vpack.c.bf16 %v1474, %v1470
        %v1507 = vpack.c.bf16 %v1475, %v1471
        %v1508 = vpack.c.bf16 %v1476, %v1472
        %v1509 = vpack.c.bf16 %v1477, %v1473
        %v1510 = vld [vmem:[%s8] sm:$0xff]
        %v1511 = vld [vmem:[%s8 + $0x8] sm:$0xff]
        %v1512 = vld [vmem:[%s8 + $0x10] sm:$0xff]
        %v1513 = vld [vmem:[%s8 + $0x18] sm:$0xff]
        %v1514 = vld [vmem:[%s8 + $0x20] sm:$0xff]
        %v1515 = vld [vmem:[%s8 + $0x28] sm:$0xff]
        %v1516 = vld [vmem:[%s8 + $0x30] sm:$0xff]
        %v1517 = vld [vmem:[%s8 + $0x38] sm:$0xff]
        %v1518 = vld [vmem:[%s8 + $0x40] sm:$0xff]
        %v1519 = vld [vmem:[%s8 + $0x48] sm:$0xff]
        %v1520 = vld [vmem:[%s8 + $0x50] sm:$0xff]
        %v1521 = vld [vmem:[%s8 + $0x58] sm:$0xff]
        %v1522 = vld [vmem:[%s8 + $0x60] sm:$0xff]
        %v1523 = vld [vmem:[%s8 + $0x68] sm:$0xff]
        %v1524 = vld [vmem:[%s8 + $0x70] sm:$0xff]
        %v1525 = vld [vmem:[%s8 + $0x78] sm:$0xff]
        %1527 = vset.pattern.permute.xlu0 0
        %1528 = vperm.xlu0 %1527, %v1510
        %v1529 = vpop.permute.xlu0 %1528
        %1532 = vset.pattern.permute.xlu0 0
        %1533 = vperm.xlu0 %1532, %v1511
        %v1534 = vpop.permute.xlu0 %1533
        %1537 = vset.pattern.permute.xlu0 0
        %1538 = vperm.xlu0 %1537, %v1512
        %v1539 = vpop.permute.xlu0 %1538
        %1542 = vset.pattern.permute.xlu0 0
        %1543 = vperm.xlu0 %1542, %v1513
        %v1544 = vpop.permute.xlu0 %1543
        %1547 = vset.pattern.permute.xlu0 0
        %1548 = vperm.xlu0 %1547, %v1514
        %v1549 = vpop.permute.xlu0 %1548
        %1552 = vset.pattern.permute.xlu0 0
        %1553 = vperm.xlu0 %1552, %v1515
        %v1554 = vpop.permute.xlu0 %1553
        %1557 = vset.pattern.permute.xlu0 0
        %1558 = vperm.xlu0 %1557, %v1516
        %v1559 = vpop.permute.xlu0 %1558
        %1562 = vset.pattern.permute.xlu0 0
        %1563 = vperm.xlu0 %1562, %v1517
        %v1564 = vpop.permute.xlu0 %1563
        %1567 = vset.pattern.permute.xlu0 0
        %1568 = vperm.xlu0 %1567, %v1518
        %v1569 = vpop.permute.xlu0 %1568
        %1572 = vset.pattern.permute.xlu0 0
        %1573 = vperm.xlu0 %1572, %v1519
        %v1574 = vpop.permute.xlu0 %1573
        %1577 = vset.pattern.permute.xlu0 0
        %1578 = vperm.xlu0 %1577, %v1520
        %v1579 = vpop.permute.xlu0 %1578
        %1582 = vset.pattern.permute.xlu0 0
        %1583 = vperm.xlu0 %1582, %v1521
        %v1584 = vpop.permute.xlu0 %1583
        %1587 = vset.pattern.permute.xlu0 0
        %1588 = vperm.xlu0 %1587, %v1522
        %v1589 = vpop.permute.xlu0 %1588
        %1592 = vset.pattern.permute.xlu0 0
        %1593 = vperm.xlu0 %1592, %v1523
        %v1594 = vpop.permute.xlu0 %1593
        %1597 = vset.pattern.permute.xlu0 0
        %1598 = vperm.xlu0 %1597, %v1524
        %v1599 = vpop.permute.xlu0 %1598
        %1602 = vset.pattern.permute.xlu0 0
        %1603 = vperm.xlu0 %1602, %v1525
        %v1604 = vpop.permute.xlu0 %1603
        %v1622 = vunpack.c.l.b16 %v1478
        %v1623 = vunpack.c.l.b16 %v1479
        %v1624 = vunpack.c.l.b16 %v1480
        %v1625 = vunpack.c.l.b16 %v1481
        %v1626 = vunpack.c.l.b16 %v1482
        %v1627 = vunpack.c.l.b16 %v1483
        %v1628 = vunpack.c.l.b16 %v1484
        %v1629 = vunpack.c.l.b16 %v1485
        %v1630 = vunpack.c.l.b16 %v1486
        %v1631 = vunpack.c.l.b16 %v1487
        %v1632 = vunpack.c.l.b16 %v1488
        %v1633 = vunpack.c.l.b16 %v1489
        %v1634 = vunpack.c.l.b16 %v1490
        %v1635 = vunpack.c.l.b16 %v1491
        %v1636 = vunpack.c.l.b16 %v1492
        %v1637 = vunpack.c.l.b16 %v1493
        %v1638 = vpack.c.b16 %v1623, %v1622
        %v1639 = vpack.c.b16 %v1625, %v1624
        %v1640 = vpack.c.b16 %v1627, %v1626
        %v1641 = vpack.c.b16 %v1629, %v1628
        %v1642 = vpack.c.b16 %v1631, %v1630
        %v1643 = vpack.c.b16 %v1633, %v1632
        %v1644 = vpack.c.b16 %v1635, %v1634
        %v1645 = vpack.c.b16 %v1637, %v1636
        %v1647 = vsel %vm1005, %v1638, 0
        %v1650 = vsel %vm1005, %v1639, 0
        %v1653 = vsel %vm1005, %v1640, 0
        %v1656 = vsel %vm1005, %v1641, 0
        %v1659 = vsel %vm1005, %v1642, 0
        %v1662 = vsel %vm1005, %v1643, 0
        %v1665 = vsel %vm1005, %v1644, 0
        %v1668 = vsel %vm1005, %v1645, 0
        %1670 = vmatprep.subr.bf16.mxu0 %v1495
        %1671 = vmatpush1.bf16.msra.mxu0 %v1494
        %1672 = vmatprep.subr.bf16.mxu0 %v1499
        %1673 = vmatpush1.bf16.msra.mxu0 %v1498
        %1674 = vmatprep.subr.bf16.mxu0 %v1503
        %1675 = vmatpush1.bf16.msra.mxu0 %v1502
        %1676 = vmatprep.subr.bf16.mxu0 %v1507
        %1677 = vmatpush1.bf16.msra.mxu0 %v1506
        %1678 = vmatprep.subr.bf16.mxu0 0
        %1679 = vmatpush1.bf16.msra.mxu0 0
        %1680 = vmatprep.subr.bf16.mxu0 0
        %1681 = vmatpush1.bf16.msra.mxu0 0
        %1682 = vmatprep.subr.bf16.mxu0 0
        %1683 = vmatpush1.bf16.msra.mxu0 0
        %1684 = vmatprep.subr.bf16.mxu0 0
        %1685 = vmatpush1.bf16.msra.mxu0 0
        %1686 = vmatprep.subr.bf16.mxu0 0
        %1687 = vmatpush1.bf16.msra.mxu0 0
        %1688 = vmatprep.subr.bf16.mxu0 0
        %1689 = vmatpush1.bf16.msra.mxu0 0
        %1690 = vmatprep.subr.bf16.mxu0 0
        %1691 = vmatpush1.bf16.msra.mxu0 0
        %1692 = vmatprep.subr.bf16.mxu0 0
        %1693 = vmatpush1.bf16.msra.mxu0 0
        %1694 = vmatprep.subr.bf16.mxu0 0
        %1695 = vmatpush1.bf16.msra.mxu0 0
        %1696 = vmatprep.subr.bf16.mxu0 0
        %1697 = vmatpush1.bf16.msra.mxu0 0
        %1698 = vmatprep.subr.bf16.mxu0 0
        %1699 = vmatpush1.bf16.msra.mxu0 0
        %1700 = vmatprep.subr.bf16.mxu0 0
        %1701 = vmatpush1.bf16.msra.mxu0 0
        %1702 = vmatprep.mubr.bf16.mxu0 0
        %1703 = vmatmul.mubr.bf16.gmra.mrb[0].mxu0 %v1647
        %v1704 = vpop.f32.mrb[0].mxu0
        %v1705 = vadd.f32 %v1529, %v1704
        %v1706 = vpop.f32.mrb[0].mxu0
        %v1707 = vadd.f32 %v1529, %v1706
        %v1708 = vpop.f32.mrb[0].mxu0
        %v1709 = vadd.f32 %v1534, %v1708
        %v1710 = vpop.f32.mrb[0].mxu0
        %v1711 = vadd.f32 %v1534, %v1710
        %1712 = vmatprep.mubr.bf16.mxu0 0
        %1713 = vmatmul.mubr.bf16.gmra.mrb[0].mxu0 %v1650
        %v1714 = vpop.f32.mrb[0].mxu0
        %v1715 = vadd.f32 %v1539, %v1714
        %v1716 = vpop.f32.mrb[0].mxu0
        %v1717 = vadd.f32 %v1539, %v1716
        %v1718 = vpop.f32.mrb[0].mxu0
        %v1719 = vadd.f32 %v1544, %v1718
        %v1720 = vpop.f32.mrb[0].mxu0
        %v1721 = vadd.f32 %v1544, %v1720
        %1722 = vmatprep.mubr.bf16.mxu0 0
        %1723 = vmatmul.mubr.bf16.gmra.mrb[0].mxu0 %v1653
        %v1724 = vpop.f32.mrb[0].mxu0
        %v1725 = vadd.f32 %v1549, %v1724
        %v1726 = vpop.f32.mrb[0].mxu0
        %v1727 = vadd.f32 %v1549, %v1726
        %v1728 = vpop.f32.mrb[0].mxu0
        %v1729 = vadd.f32 %v1554, %v1728
        %v1730 = vpop.f32.mrb[0].mxu0
        %v1731 = vadd.f32 %v1554, %v1730
        %1732 = vmatprep.mubr.bf16.mxu0 0
        %1733 = vmatmul.mubr.bf16.gmra.mrb[0].mxu0 %v1656
        %v1734 = vpop.f32.mrb[0].mxu0
        %v1735 = vadd.f32 %v1559, %v1734
        %v1736 = vpop.f32.mrb[0].mxu0
        %v1737 = vadd.f32 %v1559, %v1736
        %v1738 = vpop.f32.mrb[0].mxu0
        %v1739 = vadd.f32 %v1564, %v1738
        %v1740 = vpop.f32.mrb[0].mxu0
        %v1741 = vadd.f32 %v1564, %v1740
        %1742 = vmatprep.mubr.bf16.mxu0 0
        %1743 = vmatmul.mubr.bf16.gmra.mrb[0].mxu0 %v1659
        %v1744 = vpop.f32.mrb[0].mxu0
        %v1745 = vadd.f32 %v1569, %v1744
        %v1746 = vpop.f32.mrb[0].mxu0
        %v1747 = vadd.f32 %v1569, %v1746
        %v1748 = vpop.f32.mrb[0].mxu0
        %v1749 = vadd.f32 %v1574, %v1748
        %v1750 = vpop.f32.mrb[0].mxu0
        %v1751 = vadd.f32 %v1574, %v1750
        %1752 = vmatprep.mubr.bf16.mxu0 0
        %1753 = vmatmul.mubr.bf16.gmra.mrb[0].mxu0 %v1662
        %v1754 = vpop.f32.mrb[0].mxu0
        %v1755 = vadd.f32 %v1579, %v1754
        %v1756 = vpop.f32.mrb[0].mxu0
        %v1757 = vadd.f32 %v1579, %v1756
        %v1758 = vpop.f32.mrb[0].mxu0
        %v1759 = vadd.f32 %v1584, %v1758
        %v1760 = vpop.f32.mrb[0].mxu0
        %v1761 = vadd.f32 %v1584, %v1760
        %1762 = vmatprep.mubr.bf16.mxu0 0
        %1763 = vmatmul.mubr.bf16.gmra.mrb[0].mxu0 %v1665
        %v1764 = vpop.f32.mrb[0].mxu0
        %v1765 = vadd.f32 %v1589, %v1764
        %v1766 = vpop.f32.mrb[0].mxu0
        %v1767 = vadd.f32 %v1589, %v1766
        %v1768 = vpop.f32.mrb[0].mxu0
        %v1769 = vadd.f32 %v1594, %v1768
        %v1770 = vpop.f32.mrb[0].mxu0
        %v1771 = vadd.f32 %v1594, %v1770
        %1772 = vmatprep.mubr.bf16.mxu0 0
        %1773 = vmatmul.mubr.bf16.gmra.mrb[0].mxu0 %v1668
        %v1774 = vpop.f32.mrb[0].mxu0
        %v1775 = vadd.f32 %v1599, %v1774
        %v1776 = vpop.f32.mrb[0].mxu0
        %v1777 = vadd.f32 %v1599, %v1776
        %v1778 = vpop.f32.mrb[0].mxu0
        %v1779 = vadd.f32 %v1604, %v1778
        %v1780 = vpop.f32.mrb[0].mxu0
        %v1781 = vadd.f32 %v1604, %v1780
        %1782 = vdwg.mxu0
        %1783 = vmatprep.subr.bf16.mxu0 %v1497
        %1784 = vmatpush1.bf16.msra.mxu0 %v1496
        %1785 = vmatprep.subr.bf16.mxu0 %v1501
        %1786 = vmatpush1.bf16.msra.mxu0 %v1500
        %1787 = vmatprep.subr.bf16.mxu0 %v1505
        %1788 = vmatpush1.bf16.msra.mxu0 %v1504
        %1789 = vmatprep.subr.bf16.mxu0 %v1509
        %1790 = vmatpush1.bf16.msra.mxu0 %v1508
        %1791 = vmatprep.subr.bf16.mxu0 0
        %1792 = vmatpush1.bf16.msra.mxu0 0
        %1793 = vmatprep.subr.bf16.mxu0 0
        %1794 = vmatpush1.bf16.msra.mxu0 0
        %1795 = vmatprep.subr.bf16.mxu0 0
        %1796 = vmatpush1.bf16.msra.mxu0 0
        %1797 = vmatprep.subr.bf16.mxu0 0
        %1798 = vmatpush1.bf16.msra.mxu0 0
        %1799 = vmatprep.subr.bf16.mxu0 0
        %1800 = vmatpush1.bf16.msra.mxu0 0
        %1801 = vmatprep.subr.bf16.mxu0 0
        %1802 = vmatpush1.bf16.msra.mxu0 0
        %1803 = vmatprep.subr.bf16.mxu0 0
        %1804 = vmatpush1.bf16.msra.mxu0 0
        %1805 = vmatprep.subr.bf16.mxu0 0
        %1806 = vmatpush1.bf16.msra.mxu0 0
        %1807 = vmatprep.subr.bf16.mxu0 0
        %1808 = vmatpush1.bf16.msra.mxu0 0
        %1809 = vmatprep.subr.bf16.mxu0 0
        %1810 = vmatpush1.bf16.msra.mxu0 0
        %1811 = vmatprep.subr.bf16.mxu0 0
        %1812 = vmatpush1.bf16.msra.mxu0 0
        %1813 = vmatprep.subr.bf16.mxu0 0
        %1814 = vmatpush1.bf16.msra.mxu0 0
        %1815 = vmatprep.mubr.bf16.mxu0 0
        %1816 = vmatmul.mubr.bf16.gmra.mrb[0].mxu0 %v1647
        %v1817 = vpop.f32.mrb[0].mxu0
        %v1818 = vadd.f32 %v1529, %v1817
        %v1819 = vpop.f32.mrb[0].mxu0
        %v1820 = vadd.f32 %v1529, %v1819
        %v1821 = vpop.f32.mrb[0].mxu0
        %v1822 = vadd.f32 %v1534, %v1821
        %v1823 = vpop.f32.mrb[0].mxu0
        %v1824 = vadd.f32 %v1534, %v1823
        %1825 = vmatprep.mubr.bf16.mxu0 0
        %1826 = vmatmul.mubr.bf16.gmra.mrb[0].mxu0 %v1650
        %v1827 = vpop.f32.mrb[0].mxu0
        %v1828 = vadd.f32 %v1539, %v1827
        %v1829 = vpop.f32.mrb[0].mxu0
        %v1830 = vadd.f32 %v1539, %v1829
        %v1831 = vpop.f32.mrb[0].mxu0
        %v1832 = vadd.f32 %v1544, %v1831
        %v1833 = vpop.f32.mrb[0].mxu0
        %v1834 = vadd.f32 %v1544, %v1833
        %1835 = vmatprep.mubr.bf16.mxu0 0
        %1836 = vmatmul.mubr.bf16.gmra.mrb[0].mxu0 %v1653
        %v1837 = vpop.f32.mrb[0].mxu0
        %v1838 = vadd.f32 %v1549, %v1837
        %v1839 = vpop.f32.mrb[0].mxu0
        %v1840 = vadd.f32 %v1549, %v1839
        %v1841 = vpop.f32.mrb[0].mxu0
        %v1842 = vadd.f32 %v1554, %v1841
        %v1843 = vpop.f32.mrb[0].mxu0
        %v1844 = vadd.f32 %v1554, %v1843
        %1845 = vmatprep.mubr.bf16.mxu0 0
        %1846 = vmatmul.mubr.bf16.gmra.mrb[0].mxu0 %v1656
        %v1847 = vpop.f32.mrb[0].mxu0
        %v1848 = vadd.f32 %v1559, %v1847
        %v1849 = vpop.f32.mrb[0].mxu0
        %v1850 = vadd.f32 %v1559, %v1849
        %v1851 = vpop.f32.mrb[0].mxu0
        %v1852 = vadd.f32 %v1564, %v1851
        %v1853 = vpop.f32.mrb[0].mxu0
        %v1854 = vadd.f32 %v1564, %v1853
        %1855 = vmatprep.mubr.bf16.mxu0 0
        %1856 = vmatmul.mubr.bf16.gmra.mrb[0].mxu0 %v1659
        %v1857 = vpop.f32.mrb[0].mxu0
        %v1858 = vadd.f32 %v1569, %v1857
        %v1859 = vpop.f32.mrb[0].mxu0
        %v1860 = vadd.f32 %v1569, %v1859
        %v1861 = vpop.f32.mrb[0].mxu0
        %v1862 = vadd.f32 %v1574, %v1861
        %v1863 = vpop.f32.mrb[0].mxu0
        %v1864 = vadd.f32 %v1574, %v1863
        %1865 = vmatprep.mubr.bf16.mxu0 0
        %1866 = vmatmul.mubr.bf16.gmra.mrb[0].mxu0 %v1662
        %v1867 = vpop.f32.mrb[0].mxu0
        %v1868 = vadd.f32 %v1579, %v1867
        %v1869 = vpop.f32.mrb[0].mxu0
        %v1870 = vadd.f32 %v1579, %v1869
        %v1871 = vpop.f32.mrb[0].mxu0
        %v1872 = vadd.f32 %v1584, %v1871
        %v1873 = vpop.f32.mrb[0].mxu0
        %v1874 = vadd.f32 %v1584, %v1873
        %1875 = vmatprep.mubr.bf16.mxu0 0
        %1876 = vmatmul.mubr.bf16.gmra.mrb[0].mxu0 %v1665
        %v1877 = vpop.f32.mrb[0].mxu0
        %v1878 = vadd.f32 %v1589, %v1877
        %v1879 = vpop.f32.mrb[0].mxu0
        %v1880 = vadd.f32 %v1589, %v1879
        %v1881 = vpop.f32.mrb[0].mxu0
        %v1882 = vadd.f32 %v1594, %v1881
        %v1883 = vpop.f32.mrb[0].mxu0
        %v1884 = vadd.f32 %v1594, %v1883
        %1885 = vmatprep.mubr.bf16.mxu0 0
        %1886 = vmatmul.mubr.bf16.gmra.mrb[0].mxu0 %v1668
        %v1887 = vpop.f32.mrb[0].mxu0
        %v1888 = vadd.f32 %v1599, %v1887
        %v1889 = vpop.f32.mrb[0].mxu0
        %v1890 = vadd.f32 %v1599, %v1889
        %v1891 = vpop.f32.mrb[0].mxu0
        %v1892 = vadd.f32 %v1604, %v1891
        %v1893 = vpop.f32.mrb[0].mxu0
        %v1894 = vadd.f32 %v1604, %v1893
        %1895 = vdwg.mxu0
        %v1896 = vmax.f32 %v1705, 0.0
        %v1897 = vmax.f32 %v1707, 0.0
        %v1898 = vmax.f32 %v1818, 0.0
        %v1899 = vmax.f32 %v1820, 0.0
        %v1900 = vmax.f32 %v1709, 0.0
        %v1901 = vmax.f32 %v1711, 0.0
        %v1902 = vmax.f32 %v1822, 0.0
        %v1903 = vmax.f32 %v1824, 0.0
        %v1904 = vmax.f32 %v1715, 0.0
        %v1905 = vmax.f32 %v1717, 0.0
        %v1906 = vmax.f32 %v1828, 0.0
        %v1907 = vmax.f32 %v1830, 0.0
        %v1908 = vmax.f32 %v1719, 0.0
        %v1909 = vmax.f32 %v1721, 0.0
        %v1910 = vmax.f32 %v1832, 0.0
        %v1911 = vmax.f32 %v1834, 0.0
        %v1912 = vmax.f32 %v1725, 0.0
        %v1913 = vmax.f32 %v1727, 0.0
        %v1914 = vmax.f32 %v1838, 0.0
        %v1915 = vmax.f32 %v1840, 0.0
        %v1916 = vmax.f32 %v1729, 0.0
        %v1917 = vmax.f32 %v1731, 0.0
        %v1918 = vmax.f32 %v1842, 0.0
        %v1919 = vmax.f32 %v1844, 0.0
        %v1920 = vmax.f32 %v1735, 0.0
        %v1921 = vmax.f32 %v1737, 0.0
        %v1922 = vmax.f32 %v1848, 0.0
        %v1923 = vmax.f32 %v1850, 0.0
        %v1924 = vmax.f32 %v1739, 0.0
        %v1925 = vmax.f32 %v1741, 0.0
        %v1926 = vmax.f32 %v1852, 0.0
        %v1927 = vmax.f32 %v1854, 0.0
        %v1928 = vmax.f32 %v1745, 0.0
        %v1929 = vmax.f32 %v1747, 0.0
        %v1930 = vmax.f32 %v1858, 0.0
        %v1931 = vmax.f32 %v1860, 0.0
        %v1932 = vmax.f32 %v1749, 0.0
        %v1933 = vmax.f32 %v1751, 0.0
        %v1934 = vmax.f32 %v1862, 0.0
        %v1935 = vmax.f32 %v1864, 0.0
        %v1936 = vmax.f32 %v1755, 0.0
        %v1937 = vmax.f32 %v1757, 0.0
        %v1938 = vmax.f32 %v1868, 0.0
        %v1939 = vmax.f32 %v1870, 0.0
        %v1940 = vmax.f32 %v1759, 0.0
        %v1941 = vmax.f32 %v1761, 0.0
        %v1942 = vmax.f32 %v1872, 0.0
        %v1943 = vmax.f32 %v1874, 0.0
        %v1944 = vmax.f32 %v1765, 0.0
        %v1945 = vmax.f32 %v1767, 0.0
        %v1946 = vmax.f32 %v1878, 0.0
        %v1947 = vmax.f32 %v1880, 0.0
        %v1948 = vmax.f32 %v1769, 0.0
        %v1949 = vmax.f32 %v1771, 0.0
        %v1950 = vmax.f32 %v1882, 0.0
        %v1951 = vmax.f32 %v1884, 0.0
        %v1952 = vmax.f32 %v1775, 0.0
        %v1953 = vmax.f32 %v1777, 0.0
        %v1954 = vmax.f32 %v1888, 0.0
        %v1955 = vmax.f32 %v1890, 0.0
        %v1956 = vmax.f32 %v1779, 0.0
        %v1957 = vmax.f32 %v1781, 0.0
        %v1958 = vmax.f32 %v1892, 0.0
        %v1959 = vmax.f32 %v1894, 0.0
        %v1960 = vld [vmem:[%s9] sm:$0xf]
        %v1961 = vld [vmem:[%s9 + $0x4] sm:$0xf]
        %v1962 = vld [vmem:[%s9 + $0x8] sm:$0xf]
        %v1963 = vld [vmem:[%s9 + $0xc] sm:$0xf]
        %v1964 = vld [vmem:[%s9 + $0x10] sm:$0xf]
        %v1965 = vld [vmem:[%s9 + $0x14] sm:$0xf]
        %v1966 = vld [vmem:[%s9 + $0x18] sm:$0xf]
        %v1967 = vld [vmem:[%s9 + $0x1c] sm:$0xf]
        %v1968 = vld [vmem:[%s9 + $0x20] sm:$0xf]
        %v1969 = vld [vmem:[%s9 + $0x24] sm:$0xf]
        %v1970 = vld [vmem:[%s9 + $0x28] sm:$0xf]
        %v1971 = vld [vmem:[%s9 + $0x2c] sm:$0xf]
        %v1972 = vld [vmem:[%s9 + $0x30] sm:$0xf]
        %v1973 = vld [vmem:[%s9 + $0x34] sm:$0xf]
        %v1974 = vld [vmem:[%s9 + $0x38] sm:$0xf]
        %v1975 = vld [vmem:[%s9 + $0x3c] sm:$0xf]
        %v1976 = vld [vmem:[%s9 + $0x40] sm:$0xf]
        %v1977 = vld [vmem:[%s9 + $0x44] sm:$0xf]
        %v1978 = vld [vmem:[%s9 + $0x48] sm:$0xf]
        %v1979 = vld [vmem:[%s9 + $0x4c] sm:$0xf]
        %v1980 = vld [vmem:[%s9 + $0x50] sm:$0xf]
        %v1981 = vld [vmem:[%s9 + $0x54] sm:$0xf]
        %v1982 = vld [vmem:[%s9 + $0x58] sm:$0xf]
        %v1983 = vld [vmem:[%s9 + $0x5c] sm:$0xf]
        %v1984 = vld [vmem:[%s9 + $0x60] sm:$0xf]
        %v1985 = vld [vmem:[%s9 + $0x64] sm:$0xf]
        %v1986 = vld [vmem:[%s9 + $0x68] sm:$0xf]
        %v1987 = vld [vmem:[%s9 + $0x6c] sm:$0xf]
        %v1988 = vld [vmem:[%s9 + $0x70] sm:$0xf]
        %v1989 = vld [vmem:[%s9 + $0x74] sm:$0xf]
        %v1990 = vld [vmem:[%s9 + $0x78] sm:$0xf]
        %v1991 = vld [vmem:[%s9 + $0x7c] sm:$0xf]
        %v1992 = vpack.c.bf16 %v1900, %v1896
        %v1993 = vpack.c.bf16 %v1901, %v1897
        %v1994 = vpack.c.bf16 %v1902, %v1898
        %v1995 = vpack.c.bf16 %v1903, %v1899
        %v1996 = vpack.c.bf16 %v1908, %v1904
        %v1997 = vpack.c.bf16 %v1909, %v1905
        %v1998 = vpack.c.bf16 %v1910, %v1906
        %v1999 = vpack.c.bf16 %v1911, %v1907
        %v2000 = vpack.c.bf16 %v1916, %v1912
        %v2001 = vpack.c.bf16 %v1917, %v1913
        %v2002 = vpack.c.bf16 %v1918, %v1914
        %v2003 = vpack.c.bf16 %v1919, %v1915
        %v2004 = vpack.c.bf16 %v1924, %v1920
        %v2005 = vpack.c.bf16 %v1925, %v1921
        %v2006 = vpack.c.bf16 %v1926, %v1922
        %v2007 = vpack.c.bf16 %v1927, %v1923
        %v2008 = vpack.c.bf16 %v1932, %v1928
        %v2009 = vpack.c.bf16 %v1933, %v1929
        %v2010 = vpack.c.bf16 %v1934, %v1930
        %v2011 = vpack.c.bf16 %v1935, %v1931
        %v2012 = vpack.c.bf16 %v1940, %v1936
        %v2013 = vpack.c.bf16 %v1941, %v1937
        %v2014 = vpack.c.bf16 %v1942, %v1938
        %v2015 = vpack.c.bf16 %v1943, %v1939
        %v2016 = vpack.c.bf16 %v1948, %v1944
        %v2017 = vpack.c.bf16 %v1949, %v1945
        %v2018 = vpack.c.bf16 %v1950, %v1946
        %v2019 = vpack.c.bf16 %v1951, %v1947
        %v2020 = vpack.c.bf16 %v1956, %v1952
        %v2021 = vpack.c.bf16 %v1957, %v1953
        %v2022 = vpack.c.bf16 %v1958, %v1954
        %v2023 = vpack.c.bf16 %v1959, %v1955
        %v2024 = vld [vmem:[%s10] sm:$0xff]
        %v2025 = vld [vmem:[%s10 + $0x8] sm:$0xff]
        %v2026 = vld [vmem:[%s10 + $0x10] sm:$0xff]
        %v2027 = vld [vmem:[%s10 + $0x18] sm:$0xff]
        %v2028 = vld [vmem:[%s10 + $0x20] sm:$0xff]
        %v2029 = vld [vmem:[%s10 + $0x28] sm:$0xff]
        %v2030 = vld [vmem:[%s10 + $0x30] sm:$0xff]
        %v2031 = vld [vmem:[%s10 + $0x38] sm:$0xff]
        %v2032 = vld [vmem:[%s10 + $0x40] sm:$0xff]
        %v2033 = vld [vmem:[%s10 + $0x48] sm:$0xff]
        %v2034 = vld [vmem:[%s10 + $0x50] sm:$0xff]
        %v2035 = vld [vmem:[%s10 + $0x58] sm:$0xff]
        %v2036 = vld [vmem:[%s10 + $0x60] sm:$0xff]
        %v2037 = vld [vmem:[%s10 + $0x68] sm:$0xff]
        %v2038 = vld [vmem:[%s10 + $0x70] sm:$0xff]
        %v2039 = vld [vmem:[%s10 + $0x78] sm:$0xff]
        %v2040 = vld [vmem:[%s10 + $0x80] sm:$0xff]
        %v2041 = vld [vmem:[%s10 + $0x88] sm:$0xff]
        %v2042 = vld [vmem:[%s10 + $0x90] sm:$0xff]
        %v2043 = vld [vmem:[%s10 + $0x98] sm:$0xff]
        %v2044 = vld [vmem:[%s10 + $0xa0] sm:$0xff]
        %v2045 = vld [vmem:[%s10 + $0xa8] sm:$0xff]
        %v2046 = vld [vmem:[%s10 + $0xb0] sm:$0xff]
        %v2047 = vld [vmem:[%s10 + $0xb8] sm:$0xff]
        %v2048 = vld [vmem:[%s10 + $0xc0] sm:$0xff]
        %v2049 = vld [vmem:[%s10 + $0xc8] sm:$0xff]
        %v2050 = vld [vmem:[%s10 + $0xd0] sm:$0xff]
        %v2051 = vld [vmem:[%s10 + $0xd8] sm:$0xff]
        %v2052 = vld [vmem:[%s10 + $0xe0] sm:$0xff]
        %v2053 = vld [vmem:[%s10 + $0xe8] sm:$0xff]
        %v2054 = vld [vmem:[%s10 + $0xf0] sm:$0xff]
        %v2055 = vld [vmem:[%s10 + $0xf8] sm:$0xff]
        %2057 = vset.pattern.permute.xlu0 0
        %2058 = vperm.xlu0 %2057, %v2024
        %v2059 = vpop.permute.xlu0 %2058
        %2062 = vset.pattern.permute.xlu0 0
        %2063 = vperm.xlu0 %2062, %v2025
        %v2064 = vpop.permute.xlu0 %2063
        %2067 = vset.pattern.permute.xlu0 0
        %2068 = vperm.xlu0 %2067, %v2026
        %v2069 = vpop.permute.xlu0 %2068
        %2072 = vset.pattern.permute.xlu0 0
        %2073 = vperm.xlu0 %2072, %v2027
        %v2074 = vpop.permute.xlu0 %2073
        %2077 = vset.pattern.permute.xlu0 0
        %2078 = vperm.xlu0 %2077, %v2028
        %v2079 = vpop.permute.xlu0 %2078
        %2082 = vset.pattern.permute.xlu0 0
        %2083 = vperm.xlu0 %2082, %v2029
        %v2084 = vpop.permute.xlu0 %2083
        %2087 = vset.pattern.permute.xlu0 0
        %2088 = vperm.xlu0 %2087, %v2030
        %v2089 = vpop.permute.xlu0 %2088
        %2092 = vset.pattern.permute.xlu0 0
        %2093 = vperm.xlu0 %2092, %v2031
        %v2094 = vpop.permute.xlu0 %2093
        %2097 = vset.pattern.permute.xlu0 0
        %2098 = vperm.xlu0 %2097, %v2032
        %v2099 = vpop.permute.xlu0 %2098
        %2102 = vset.pattern.permute.xlu0 0
        %2103 = vperm.xlu0 %2102, %v2033
        %v2104 = vpop.permute.xlu0 %2103
        %2107 = vset.pattern.permute.xlu0 0
        %2108 = vperm.xlu0 %2107, %v2034
        %v2109 = vpop.permute.xlu0 %2108
        %2112 = vset.pattern.permute.xlu0 0
        %2113 = vperm.xlu0 %2112, %v2035
        %v2114 = vpop.permute.xlu0 %2113
        %2117 = vset.pattern.permute.xlu0 0
        %2118 = vperm.xlu0 %2117, %v2036
        %v2119 = vpop.permute.xlu0 %2118
        %2122 = vset.pattern.permute.xlu0 0
        %2123 = vperm.xlu0 %2122, %v2037
        %v2124 = vpop.permute.xlu0 %2123
        %2127 = vset.pattern.permute.xlu0 0
        %2128 = vperm.xlu0 %2127, %v2038
        %v2129 = vpop.permute.xlu0 %2128
        %2132 = vset.pattern.permute.xlu0 0
        %2133 = vperm.xlu0 %2132, %v2039
        %v2134 = vpop.permute.xlu0 %2133
        %2137 = vset.pattern.permute.xlu0 0
        %2138 = vperm.xlu0 %2137, %v2040
        %v2139 = vpop.permute.xlu0 %2138
        %2142 = vset.pattern.permute.xlu0 0
        %2143 = vperm.xlu0 %2142, %v2041
        %v2144 = vpop.permute.xlu0 %2143
        %2147 = vset.pattern.permute.xlu0 0
        %2148 = vperm.xlu0 %2147, %v2042
        %v2149 = vpop.permute.xlu0 %2148
        %2152 = vset.pattern.permute.xlu0 0
        %2153 = vperm.xlu0 %2152, %v2043
        %v2154 = vpop.permute.xlu0 %2153
        %2157 = vset.pattern.permute.xlu0 0
        %2158 = vperm.xlu0 %2157, %v2044
        %v2159 = vpop.permute.xlu0 %2158
        %2162 = vset.pattern.permute.xlu0 0
        %2163 = vperm.xlu0 %2162, %v2045
        %v2164 = vpop.permute.xlu0 %2163
        %2167 = vset.pattern.permute.xlu0 0
        %2168 = vperm.xlu0 %2167, %v2046
        %v2169 = vpop.permute.xlu0 %2168
        %2172 = vset.pattern.permute.xlu0 0
        %2173 = vperm.xlu0 %2172, %v2047
        %v2174 = vpop.permute.xlu0 %2173
        %2177 = vset.pattern.permute.xlu0 0
        %2178 = vperm.xlu0 %2177, %v2048
        %v2179 = vpop.permute.xlu0 %2178
        %2182 = vset.pattern.permute.xlu0 0
        %2183 = vperm.xlu0 %2182, %v2049
        %v2184 = vpop.permute.xlu0 %2183
        %2187 = vset.pattern.permute.xlu0 0
        %2188 = vperm.xlu0 %2187, %v2050
        %v2189 = vpop.permute.xlu0 %2188
        %2192 = vset.pattern.permute.xlu0 0
        %2193 = vperm.xlu0 %2192, %v2051
        %v2194 = vpop.permute.xlu0 %2193
        %2197 = vset.pattern.permute.xlu0 0
        %2198 = vperm.xlu0 %2197, %v2052
        %v2199 = vpop.permute.xlu0 %2198
        %2202 = vset.pattern.permute.xlu0 0
        %2203 = vperm.xlu0 %2202, %v2053
        %v2204 = vpop.permute.xlu0 %2203
        %2207 = vset.pattern.permute.xlu0 0
        %2208 = vperm.xlu0 %2207, %v2054
        %v2209 = vpop.permute.xlu0 %2208
        %2212 = vset.pattern.permute.xlu0 0
        %2213 = vperm.xlu0 %2212, %v2055
        %v2214 = vpop.permute.xlu0 %2213
        %v2248 = vunpack.c.l.b16 %v1960
        %v2249 = vunpack.c.l.b16 %v1961
        %v2250 = vunpack.c.l.b16 %v1962
        %v2251 = vunpack.c.l.b16 %v1963
        %v2252 = vunpack.c.l.b16 %v1964
        %v2253 = vunpack.c.l.b16 %v1965
        %v2254 = vunpack.c.l.b16 %v1966
        %v2255 = vunpack.c.l.b16 %v1967
        %v2256 = vunpack.c.l.b16 %v1968
        %v2257 = vunpack.c.l.b16 %v1969
        %v2258 = vunpack.c.l.b16 %v1970
        %v2259 = vunpack.c.l.b16 %v1971
        %v2260 = vunpack.c.l.b16 %v1972
        %v2261 = vunpack.c.l.b16 %v1973
        %v2262 = vunpack.c.l.b16 %v1974
        %v2263 = vunpack.c.l.b16 %v1975
        %v2264 = vunpack.c.l.b16 %v1976
        %v2265 = vunpack.c.l.b16 %v1977
        %v2266 = vunpack.c.l.b16 %v1978
        %v2267 = vunpack.c.l.b16 %v1979
        %v2268 = vunpack.c.l.b16 %v1980
        %v2269 = vunpack.c.l.b16 %v1981
        %v2270 = vunpack.c.l.b16 %v1982
        %v2271 = vunpack.c.l.b16 %v1983
        %v2272 = vunpack.c.l.b16 %v1984
        %v2273 = vunpack.c.l.b16 %v1985
        %v2274 = vunpack.c.l.b16 %v1986
        %v2275 = vunpack.c.l.b16 %v1987
        %v2276 = vunpack.c.l.b16 %v1988
        %v2277 = vunpack.c.l.b16 %v1989
        %v2278 = vunpack.c.l.b16 %v1990
        %v2279 = vunpack.c.l.b16 %v1991
        %v2280 = vpack.c.b16 %v2249, %v2248
        %v2281 = vpack.c.b16 %v2251, %v2250
        %v2282 = vpack.c.b16 %v2253, %v2252
        %v2283 = vpack.c.b16 %v2255, %v2254
        %v2284 = vpack.c.b16 %v2257, %v2256
        %v2285 = vpack.c.b16 %v2259, %v2258
        %v2286 = vpack.c.b16 %v2261, %v2260
        %v2287 = vpack.c.b16 %v2263, %v2262
        %v2288 = vpack.c.b16 %v2265, %v2264
        %v2289 = vpack.c.b16 %v2267, %v2266
        %v2290 = vpack.c.b16 %v2269, %v2268
        %v2291 = vpack.c.b16 %v2271, %v2270
        %v2292 = vpack.c.b16 %v2273, %v2272
        %v2293 = vpack.c.b16 %v2275, %v2274
        %v2294 = vpack.c.b16 %v2277, %v2276
        %v2295 = vpack.c.b16 %v2279, %v2278
        %2312 = vmatprep.subr.bf16.mxu0 %v1993
        %2313 = vmatpush1.bf16.msra.mxu0 %v1992
        %2314 = vmatprep.subr.bf16.mxu0 %v1997
        %2315 = vmatpush1.bf16.msra.mxu0 %v1996
        %2316 = vmatprep.subr.bf16.mxu0 %v2001
        %2317 = vmatpush1.bf16.msra.mxu0 %v2000
        %2318 = vmatprep.subr.bf16.mxu0 %v2005
        %2319 = vmatpush1.bf16.msra.mxu0 %v2004
        %2320 = vmatprep.subr.bf16.mxu0 %v2009
        %2321 = vmatpush1.bf16.msra.mxu0 %v2008
        %2322 = vmatprep.subr.bf16.mxu0 %v2013
        %2323 = vmatpush1.bf16.msra.mxu0 %v2012
        %2324 = vmatprep.subr.bf16.mxu0 %v2017
        %2325 = vmatpush1.bf16.msra.mxu0 %v2016
        %2326 = vmatprep.subr.bf16.mxu0 %v2021
        %2327 = vmatpush1.bf16.msra.mxu0 %v2020
        %2328 = vmatprep.subr.bf16.mxu0 0
        %2329 = vmatpush1.bf16.msra.mxu0 0
        %2330 = vmatprep.subr.bf16.mxu0 0
        %2331 = vmatpush1.bf16.msra.mxu0 0
        %2332 = vmatprep.subr.bf16.mxu0 0
        %2333 = vmatpush1.bf16.msra.mxu0 0
        %2334 = vmatprep.subr.bf16.mxu0 0
        %2335 = vmatpush1.bf16.msra.mxu0 0
        %2336 = vmatprep.subr.bf16.mxu0 0
        %2337 = vmatpush1.bf16.msra.mxu0 0
        %2338 = vmatprep.subr.bf16.mxu0 0
        %2339 = vmatpush1.bf16.msra.mxu0 0
        %2340 = vmatprep.subr.bf16.mxu0 0
        %2341 = vmatpush1.bf16.msra.mxu0 0
        %2342 = vmatprep.subr.bf16.mxu0 0
        %2343 = vmatpush1.bf16.msra.mxu0 0
        %2344 = vmatprep.mubr.bf16.mxu0 0
        %2345 = vmatmul.mubr.bf16.gmra.mrb[0].mxu0 %v2280
        %v2346 = vpop.f32.mrb[0].mxu0
        %v2347 = vadd.f32 %v2059, %v2346
        %v2348 = vpop.f32.mrb[0].mxu0
        %v2349 = vadd.f32 %v2059, %v2348
        %v2350 = vpop.f32.mrb[0].mxu0
        %v2351 = vadd.f32 %v2064, %v2350
        %v2352 = vpop.f32.mrb[0].mxu0
        %v2353 = vadd.f32 %v2064, %v2352
        %2354 = vmatprep.mubr.bf16.mxu0 0
        %2355 = vmatmul.mubr.bf16.gmra.mrb[0].mxu0 %v2281
        %v2356 = vpop.f32.mrb[0].mxu0
        %v2357 = vadd.f32 %v2069, %v2356
        %v2358 = vpop.f32.mrb[0].mxu0
        %v2359 = vadd.f32 %v2069, %v2358
        %v2360 = vpop.f32.mrb[0].mxu0
        %v2361 = vadd.f32 %v2074, %v2360
        %v2362 = vpop.f32.mrb[0].mxu0
        %v2363 = vadd.f32 %v2074, %v2362
        %2364 = vmatprep.mubr.bf16.mxu0 0
        %2365 = vmatmul.mubr.bf16.gmra.mrb[0].mxu0 %v2282
        %v2366 = vpop.f32.mrb[0].mxu0
        %v2367 = vadd.f32 %v2079, %v2366
        %v2368 = vpop.f32.mrb[0].mxu0
        %v2369 = vadd.f32 %v2079, %v2368
        %v2370 = vpop.f32.mrb[0].mxu0
        %v2371 = vadd.f32 %v2084, %v2370
        %v2372 = vpop.f32.mrb[0].mxu0
        %v2373 = vadd.f32 %v2084, %v2372
        %2374 = vmatprep.mubr.bf16.mxu0 0
        %2375 = vmatmul.mubr.bf16.gmra.mrb[0].mxu0 %v2283
        %v2376 = vpop.f32.mrb[0].mxu0
        %v2377 = vadd.f32 %v2089, %v2376
        %v2378 = vpop.f32.mrb[0].mxu0
        %v2379 = vadd.f32 %v2089, %v2378
        %v2380 = vpop.f32.mrb[0].mxu0
        %v2381 = vadd.f32 %v2094, %v2380
        %v2382 = vpop.f32.mrb[0].mxu0
        %v2383 = vadd.f32 %v2094, %v2382
        %2384 = vmatprep.mubr.bf16.mxu0 0
        %2385 = vmatmul.mubr.bf16.gmra.mrb[0].mxu0 %v2284
        %v2386 = vpop.f32.mrb[0].mxu0
        %v2387 = vadd.f32 %v2099, %v2386
        %v2388 = vpop.f32.mrb[0].mxu0
        %v2389 = vadd.f32 %v2099, %v2388
        %v2390 = vpop.f32.mrb[0].mxu0
        %v2391 = vadd.f32 %v2104, %v2390
        %v2392 = vpop.f32.mrb[0].mxu0
        %v2393 = vadd.f32 %v2104, %v2392
        %2394 = vmatprep.mubr.bf16.mxu0 0
        %2395 = vmatmul.mubr.bf16.gmra.mrb[0].mxu0 %v2285
        %v2396 = vpop.f32.mrb[0].mxu0
        %v2397 = vadd.f32 %v2109, %v2396
        %v2398 = vpop.f32.mrb[0].mxu0
        %v2399 = vadd.f32 %v2109, %v2398
        %v2400 = vpop.f32.mrb[0].mxu0
        %v2401 = vadd.f32 %v2114, %v2400
        %v2402 = vpop.f32.mrb[0].mxu0
        %v2403 = vadd.f32 %v2114, %v2402
        %2404 = vmatprep.mubr.bf16.mxu0 0
        %2405 = vmatmul.mubr.bf16.gmra.mrb[0].mxu0 %v2286
        %v2406 = vpop.f32.mrb[0].mxu0
        %v2407 = vadd.f32 %v2119, %v2406
        %v2408 = vpop.f32.mrb[0].mxu0
        %v2409 = vadd.f32 %v2119, %v2408
        %v2410 = vpop.f32.mrb[0].mxu0
        %v2411 = vadd.f32 %v2124, %v2410
        %v2412 = vpop.f32.mrb[0].mxu0
        %v2413 = vadd.f32 %v2124, %v2412
        %2414 = vmatprep.mubr.bf16.mxu0 0
        %2415 = vmatmul.mubr.bf16.gmra.mrb[0].mxu0 %v2287
        %v2416 = vpop.f32.mrb[0].mxu0
        %v2417 = vadd.f32 %v2129, %v2416
        %v2418 = vpop.f32.mrb[0].mxu0
        %v2419 = vadd.f32 %v2129, %v2418
        %v2420 = vpop.f32.mrb[0].mxu0
        %v2421 = vadd.f32 %v2134, %v2420
        %v2422 = vpop.f32.mrb[0].mxu0
        %v2423 = vadd.f32 %v2134, %v2422
        %2424 = vmatprep.mubr.bf16.mxu0 0
        %2425 = vmatmul.mubr.bf16.gmra.mrb[0].mxu0 %v2288
        %v2426 = vpop.f32.mrb[0].mxu0
        %v2427 = vadd.f32 %v2139, %v2426
        %v2428 = vpop.f32.mrb[0].mxu0
        %v2429 = vadd.f32 %v2139, %v2428
        %v2430 = vpop.f32.mrb[0].mxu0
        %v2431 = vadd.f32 %v2144, %v2430
        %v2432 = vpop.f32.mrb[0].mxu0
        %v2433 = vadd.f32 %v2144, %v2432
        %2434 = vmatprep.mubr.bf16.mxu0 0
        %2435 = vmatmul.mubr.bf16.gmra.mrb[0].mxu0 %v2289
        %v2436 = vpop.f32.mrb[0].mxu0
        %v2437 = vadd.f32 %v2149, %v2436
        %v2438 = vpop.f32.mrb[0].mxu0
        %v2439 = vadd.f32 %v2149, %v2438
        %v2440 = vpop.f32.mrb[0].mxu0
        %v2441 = vadd.f32 %v2154, %v2440
        %v2442 = vpop.f32.mrb[0].mxu0
        %v2443 = vadd.f32 %v2154, %v2442
        %2444 = vmatprep.mubr.bf16.mxu0 0
        %2445 = vmatmul.mubr.bf16.gmra.mrb[0].mxu0 %v2290
        %v2446 = vpop.f32.mrb[0].mxu0
        %v2447 = vadd.f32 %v2159, %v2446
        %v2448 = vpop.f32.mrb[0].mxu0
        %v2449 = vadd.f32 %v2159, %v2448
        %v2450 = vpop.f32.mrb[0].mxu0
        %v2451 = vadd.f32 %v2164, %v2450
        %v2452 = vpop.f32.mrb[0].mxu0
        %v2453 = vadd.f32 %v2164, %v2452
        %2454 = vmatprep.mubr.bf16.mxu0 0
        %2455 = vmatmul.mubr.bf16.gmra.mrb[0].mxu0 %v2291
        %v2456 = vpop.f32.mrb[0].mxu0
        %v2457 = vadd.f32 %v2169, %v2456
        %v2458 = vpop.f32.mrb[0].mxu0
        %v2459 = vadd.f32 %v2169, %v2458
        %v2460 = vpop.f32.mrb[0].mxu0
        %v2461 = vadd.f32 %v2174, %v2460
        %v2462 = vpop.f32.mrb[0].mxu0
        %v2463 = vadd.f32 %v2174, %v2462
        %2464 = vmatprep.mubr.bf16.mxu0 0
        %2465 = vmatmul.mubr.bf16.gmra.mrb[0].mxu0 %v2292
        %v2466 = vpop.f32.mrb[0].mxu0
        %v2467 = vadd.f32 %v2179, %v2466
        %v2468 = vpop.f32.mrb[0].mxu0
        %v2469 = vadd.f32 %v2179, %v2468
        %v2470 = vpop.f32.mrb[0].mxu0
        %v2471 = vadd.f32 %v2184, %v2470
        %v2472 = vpop.f32.mrb[0].mxu0
        %v2473 = vadd.f32 %v2184, %v2472
        %2474 = vmatprep.mubr.bf16.mxu0 0
        %2475 = vmatmul.mubr.bf16.gmra.mrb[0].mxu0 %v2293
        %v2476 = vpop.f32.mrb[0].mxu0
        %v2477 = vadd.f32 %v2189, %v2476
        %v2478 = vpop.f32.mrb[0].mxu0
        %v2479 = vadd.f32 %v2189, %v2478
        %v2480 = vpop.f32.mrb[0].mxu0
        %v2481 = vadd.f32 %v2194, %v2480
        %v2482 = vpop.f32.mrb[0].mxu0
        %v2483 = vadd.f32 %v2194, %v2482
        %2484 = vmatprep.mubr.bf16.mxu0 0
        %2485 = vmatmul.mubr.bf16.gmra.mrb[0].mxu0 %v2294
        %v2486 = vpop.f32.mrb[0].mxu0
        %v2487 = vadd.f32 %v2199, %v2486
        %v2488 = vpop.f32.mrb[0].mxu0
        %v2489 = vadd.f32 %v2199, %v2488
        %v2490 = vpop.f32.mrb[0].mxu0
        %v2491 = vadd.f32 %v2204, %v2490
        %v2492 = vpop.f32.mrb[0].mxu0
        %v2493 = vadd.f32 %v2204, %v2492
        %2494 = vmatprep.mubr.bf16.mxu0 0
        %2495 = vmatmul.mubr.bf16.gmra.mrb[0].mxu0 %v2295
        %v2496 = vpop.f32.mrb[0].mxu0
        %v2497 = vadd.f32 %v2209, %v2496
        %v2498 = vpop.f32.mrb[0].mxu0
        %v2499 = vadd.f32 %v2209, %v2498
        %v2500 = vpop.f32.mrb[0].mxu0
        %v2501 = vadd.f32 %v2214, %v2500
        %v2502 = vpop.f32.mrb[0].mxu0
        %v2503 = vadd.f32 %v2214, %v2502
        %2504 = vdwg.mxu0
        %2505 = vmatprep.subr.bf16.mxu0 %v1995
        %2506 = vmatpush1.bf16.msra.mxu0 %v1994
        %2507 = vmatprep.subr.bf16.mxu0 %v1999
        %2508 = vmatpush1.bf16.msra.mxu0 %v1998
        %2509 = vmatprep.subr.bf16.mxu0 %v2003
        %2510 = vmatpush1.bf16.msra.mxu0 %v2002
        %2511 = vmatprep.subr.bf16.mxu0 %v2007
        %2512 = vmatpush1.bf16.msra.mxu0 %v2006
        %2513 = vmatprep.subr.bf16.mxu0 %v2011
        %2514 = vmatpush1.bf16.msra.mxu0 %v2010
        %2515 = vmatprep.subr.bf16.mxu0 %v2015
        %2516 = vmatpush1.bf16.msra.mxu0 %v2014
        %2517 = vmatprep.subr.bf16.mxu0 %v2019
        %2518 = vmatpush1.bf16.msra.mxu0 %v2018
        %2519 = vmatprep.subr.bf16.mxu0 %v2023
        %2520 = vmatpush1.bf16.msra.mxu0 %v2022
        %2521 = vmatprep.subr.bf16.mxu0 0
        %2522 = vmatpush1.bf16.msra.mxu0 0
        %2523 = vmatprep.subr.bf16.mxu0 0
        %2524 = vmatpush1.bf16.msra.mxu0 0
        %2525 = vmatprep.subr.bf16.mxu0 0
        %2526 = vmatpush1.bf16.msra.mxu0 0
        %2527 = vmatprep.subr.bf16.mxu0 0
        %2528 = vmatpush1.bf16.msra.mxu0 0
        %2529 = vmatprep.subr.bf16.mxu0 0
        %2530 = vmatpush1.bf16.msra.mxu0 0
        %2531 = vmatprep.subr.bf16.mxu0 0
        %2532 = vmatpush1.bf16.msra.mxu0 0
        %2533 = vmatprep.subr.bf16.mxu0 0
        %2534 = vmatpush1.bf16.msra.mxu0 0
        %2535 = vmatprep.subr.bf16.mxu0 0
        %2536 = vmatpush1.bf16.msra.mxu0 0
        %2537 = vmatprep.mubr.bf16.mxu0 0
        %2538 = vmatmul.mubr.bf16.gmra.mrb[0].mxu0 %v2280
        %v2539 = vpop.f32.mrb[0].mxu0
        %v2540 = vadd.f32 %v2059, %v2539
        %v2541 = vpop.f32.mrb[0].mxu0
        %v2542 = vadd.f32 %v2059, %v2541
        %v2543 = vpop.f32.mrb[0].mxu0
        %v2544 = vadd.f32 %v2064, %v2543
        %v2545 = vpop.f32.mrb[0].mxu0
        %v2546 = vadd.f32 %v2064, %v2545
        %2547 = vmatprep.mubr.bf16.mxu0 0
        %2548 = vmatmul.mubr.bf16.gmra.mrb[0].mxu0 %v2281
        %v2549 = vpop.f32.mrb[0].mxu0
        %v2550 = vadd.f32 %v2069, %v2549
        %v2551 = vpop.f32.mrb[0].mxu0
        %v2552 = vadd.f32 %v2069, %v2551
        %v2553 = vpop.f32.mrb[0].mxu0
        %v2554 = vadd.f32 %v2074, %v2553
        %v2555 = vpop.f32.mrb[0].mxu0
        %v2556 = vadd.f32 %v2074, %v2555
        %2557 = vmatprep.mubr.bf16.mxu0 0
        %2558 = vmatmul.mubr.bf16.gmra.mrb[0].mxu0 %v2282
        %v2559 = vpop.f32.mrb[0].mxu0
        %v2560 = vadd.f32 %v2079, %v2559
        %v2561 = vpop.f32.mrb[0].mxu0
        %v2562 = vadd.f32 %v2079, %v2561
        %v2563 = vpop.f32.mrb[0].mxu0
        %v2564 = vadd.f32 %v2084, %v2563
        %v2565 = vpop.f32.mrb[0].mxu0
        %v2566 = vadd.f32 %v2084, %v2565
        %2567 = vmatprep.mubr.bf16.mxu0 0
        %2568 = vmatmul.mubr.bf16.gmra.mrb[0].mxu0 %v2283
        %v2569 = vpop.f32.mrb[0].mxu0
        %v2570 = vadd.f32 %v2089, %v2569
        %v2571 = vpop.f32.mrb[0].mxu0
        %v2572 = vadd.f32 %v2089, %v2571
        %v2573 = vpop.f32.mrb[0].mxu0
        %v2574 = vadd.f32 %v2094, %v2573
        %v2575 = vpop.f32.mrb[0].mxu0
        %v2576 = vadd.f32 %v2094, %v2575
        %2577 = vmatprep.mubr.bf16.mxu0 0
        %2578 = vmatmul.mubr.bf16.gmra.mrb[0].mxu0 %v2284
        %v2579 = vpop.f32.mrb[0].mxu0
        %v2580 = vadd.f32 %v2099, %v2579
        %v2581 = vpop.f32.mrb[0].mxu0
        %v2582 = vadd.f32 %v2099, %v2581
        %v2583 = vpop.f32.mrb[0].mxu0
        %v2584 = vadd.f32 %v2104, %v2583
        %v2585 = vpop.f32.mrb[0].mxu0
        %v2586 = vadd.f32 %v2104, %v2585
        %2587 = vmatprep.mubr.bf16.mxu0 0
        %2588 = vmatmul.mubr.bf16.gmra.mrb[0].mxu0 %v2285
        %v2589 = vpop.f32.mrb[0].mxu0
        %v2590 = vadd.f32 %v2109, %v2589
        %v2591 = vpop.f32.mrb[0].mxu0
        %v2592 = vadd.f32 %v2109, %v2591
        %v2593 = vpop.f32.mrb[0].mxu0
        %v2594 = vadd.f32 %v2114, %v2593
        %v2595 = vpop.f32.mrb[0].mxu0
        %v2596 = vadd.f32 %v2114, %v2595
        %2597 = vmatprep.mubr.bf16.mxu0 0
        %2598 = vmatmul.mubr.bf16.gmra.mrb[0].mxu0 %v2286
        %v2599 = vpop.f32.mrb[0].mxu0
        %v2600 = vadd.f32 %v2119, %v2599
        %v2601 = vpop.f32.mrb[0].mxu0
        %v2602 = vadd.f32 %v2119, %v2601
        %v2603 = vpop.f32.mrb[0].mxu0
        %v2604 = vadd.f32 %v2124, %v2603
        %v2605 = vpop.f32.mrb[0].mxu0
        %v2606 = vadd.f32 %v2124, %v2605
        %2607 = vmatprep.mubr.bf16.mxu0 0
        %2608 = vmatmul.mubr.bf16.gmra.mrb[0].mxu0 %v2287
        %v2609 = vpop.f32.mrb[0].mxu0
        %v2610 = vadd.f32 %v2129, %v2609
        %v2611 = vpop.f32.mrb[0].mxu0
        %v2612 = vadd.f32 %v2129, %v2611
        %v2613 = vpop.f32.mrb[0].mxu0
        %v2614 = vadd.f32 %v2134, %v2613
        %v2615 = vpop.f32.mrb[0].mxu0
        %v2616 = vadd.f32 %v2134, %v2615
        %2617 = vmatprep.mubr.bf16.mxu0 0
        %2618 = vmatmul.mubr.bf16.gmra.mrb[0].mxu0 %v2288
        %v2619 = vpop.f32.mrb[0].mxu0
        %v2620 = vadd.f32 %v2139, %v2619
        %v2621 = vpop.f32.mrb[0].mxu0
        %v2622 = vadd.f32 %v2139, %v2621
        %v2623 = vpop.f32.mrb[0].mxu0
        %v2624 = vadd.f32 %v2144, %v2623
        %v2625 = vpop.f32.mrb[0].mxu0
        %v2626 = vadd.f32 %v2144, %v2625
        %2627 = vmatprep.mubr.bf16.mxu0 0
        %2628 = vmatmul.mubr.bf16.gmra.mrb[0].mxu0 %v2289
        %v2629 = vpop.f32.mrb[0].mxu0
        %v2630 = vadd.f32 %v2149, %v2629
        %v2631 = vpop.f32.mrb[0].mxu0
        %v2632 = vadd.f32 %v2149, %v2631
        %v2633 = vpop.f32.mrb[0].mxu0
        %v2634 = vadd.f32 %v2154, %v2633
        %v2635 = vpop.f32.mrb[0].mxu0
        %v2636 = vadd.f32 %v2154, %v2635
        %2637 = vmatprep.mubr.bf16.mxu0 0
        %2638 = vmatmul.mubr.bf16.gmra.mrb[0].mxu0 %v2290
        %v2639 = vpop.f32.mrb[0].mxu0
        %v2640 = vadd.f32 %v2159, %v2639
        %v2641 = vpop.f32.mrb[0].mxu0
        %v2642 = vadd.f32 %v2159, %v2641
        %v2643 = vpop.f32.mrb[0].mxu0
        %v2644 = vadd.f32 %v2164, %v2643
        %v2645 = vpop.f32.mrb[0].mxu0
        %v2646 = vadd.f32 %v2164, %v2645
        %2647 = vmatprep.mubr.bf16.mxu0 0
        %2648 = vmatmul.mubr.bf16.gmra.mrb[0].mxu0 %v2291
        %v2649 = vpop.f32.mrb[0].mxu0
        %v2650 = vadd.f32 %v2169, %v2649
        %v2651 = vpop.f32.mrb[0].mxu0
        %v2652 = vadd.f32 %v2169, %v2651
        %v2653 = vpop.f32.mrb[0].mxu0
        %v2654 = vadd.f32 %v2174, %v2653
        %v2655 = vpop.f32.mrb[0].mxu0
        %v2656 = vadd.f32 %v2174, %v2655
        %2657 = vmatprep.mubr.bf16.mxu0 0
        %2658 = vmatmul.mubr.bf16.gmra.mrb[0].mxu0 %v2292
        %v2659 = vpop.f32.mrb[0].mxu0
        %v2660 = vadd.f32 %v2179, %v2659
        %v2661 = vpop.f32.mrb[0].mxu0
        %v2662 = vadd.f32 %v2179, %v2661
        %v2663 = vpop.f32.mrb[0].mxu0
        %v2664 = vadd.f32 %v2184, %v2663
        %v2665 = vpop.f32.mrb[0].mxu0
        %v2666 = vadd.f32 %v2184, %v2665
        %2667 = vmatprep.mubr.bf16.mxu0 0
        %2668 = vmatmul.mubr.bf16.gmra.mrb[0].mxu0 %v2293
        %v2669 = vpop.f32.mrb[0].mxu0
        %v2670 = vadd.f32 %v2189, %v2669
        %v2671 = vpop.f32.mrb[0].mxu0
        %v2672 = vadd.f32 %v2189, %v2671
        %v2673 = vpop.f32.mrb[0].mxu0
        %v2674 = vadd.f32 %v2194, %v2673
        %v2675 = vpop.f32.mrb[0].mxu0
        %v2676 = vadd.f32 %v2194, %v2675
        %2677 = vmatprep.mubr.bf16.mxu0 0
        %2678 = vmatmul.mubr.bf16.gmra.mrb[0].mxu0 %v2294
        %v2679 = vpop.f32.mrb[0].mxu0
        %v2680 = vadd.f32 %v2199, %v2679
        %v2681 = vpop.f32.mrb[0].mxu0
        %v2682 = vadd.f32 %v2199, %v2681
        %v2683 = vpop.f32.mrb[0].mxu0
        %v2684 = vadd.f32 %v2204, %v2683
        %v2685 = vpop.f32.mrb[0].mxu0
        %v2686 = vadd.f32 %v2204, %v2685
        %2687 = vmatprep.mubr.bf16.mxu0 0
        %2688 = vmatmul.mubr.bf16.gmra.mrb[0].mxu0 %v2295
        %v2689 = vpop.f32.mrb[0].mxu0
        %v2690 = vadd.f32 %v2209, %v2689
        %v2691 = vpop.f32.mrb[0].mxu0
        %v2692 = vadd.f32 %v2209, %v2691
        %v2693 = vpop.f32.mrb[0].mxu0
        %v2694 = vadd.f32 %v2214, %v2693
        %v2695 = vpop.f32.mrb[0].mxu0
        %v2696 = vadd.f32 %v2214, %v2695
        %2697 = vdwg.mxu0
        %v2698 = vmax.f32 %v2347, 0.0
        %v2699 = vmax.f32 %v2349, 0.0
        %v2700 = vmax.f32 %v2540, 0.0
        %v2701 = vmax.f32 %v2542, 0.0
        %v2702 = vmax.f32 %v2351, 0.0
        %v2703 = vmax.f32 %v2353, 0.0
        %v2704 = vmax.f32 %v2544, 0.0
        %v2705 = vmax.f32 %v2546, 0.0
        %v2706 = vmax.f32 %v2357, 0.0
        %v2707 = vmax.f32 %v2359, 0.0
        %v2708 = vmax.f32 %v2550, 0.0
        %v2709 = vmax.f32 %v2552, 0.0
        %v2710 = vmax.f32 %v2361, 0.0
        %v2711 = vmax.f32 %v2363, 0.0
        %v2712 = vmax.f32 %v2554, 0.0
        %v2713 = vmax.f32 %v2556, 0.0
        %v2714 = vmax.f32 %v2367, 0.0
        %v2715 = vmax.f32 %v2369, 0.0
        %v2716 = vmax.f32 %v2560, 0.0
        %v2717 = vmax.f32 %v2562, 0.0
        %v2718 = vmax.f32 %v2371, 0.0
        %v2719 = vmax.f32 %v2373, 0.0
        %v2720 = vmax.f32 %v2564, 0.0
        %v2721 = vmax.f32 %v2566, 0.0
        %v2722 = vmax.f32 %v2377, 0.0
        %v2723 = vmax.f32 %v2379, 0.0
        %v2724 = vmax.f32 %v2570, 0.0
        %v2725 = vmax.f32 %v2572, 0.0
        %v2726 = vmax.f32 %v2381, 0.0
        %v2727 = vmax.f32 %v2383, 0.0
        %v2728 = vmax.f32 %v2574, 0.0
        %v2729 = vmax.f32 %v2576, 0.0
        %v2730 = vmax.f32 %v2387, 0.0
        %v2731 = vmax.f32 %v2389, 0.0
        %v2732 = vmax.f32 %v2580, 0.0
        %v2733 = vmax.f32 %v2582, 0.0
        %v2734 = vmax.f32 %v2391, 0.0
        %v2735 = vmax.f32 %v2393, 0.0
        %v2736 = vmax.f32 %v2584, 0.0
        %v2737 = vmax.f32 %v2586, 0.0
        %v2738 = vmax.f32 %v2397, 0.0
        %v2739 = vmax.f32 %v2399, 0.0
        %v2740 = vmax.f32 %v2590, 0.0
        %v2741 = vmax.f32 %v2592, 0.0
        %v2742 = vmax.f32 %v2401, 0.0
        %v2743 = vmax.f32 %v2403, 0.0
        %v2744 = vmax.f32 %v2594, 0.0
        %v2745 = vmax.f32 %v2596, 0.0
        %v2746 = vmax.f32 %v2407, 0.0
        %v2747 = vmax.f32 %v2409, 0.0
        %v2748 = vmax.f32 %v2600, 0.0
        %v2749 = vmax.f32 %v2602, 0.0
        %v2750 = vmax.f32 %v2411, 0.0
        %v2751 = vmax.f32 %v2413, 0.0
        %v2752 = vmax.f32 %v2604, 0.0
        %v2753 = vmax.f32 %v2606, 0.0
        %v2754 = vmax.f32 %v2417, 0.0
        %v2755 = vmax.f32 %v2419, 0.0
        %v2756 = vmax.f32 %v2610, 0.0
        %v2757 = vmax.f32 %v2612, 0.0
        %v2758 = vmax.f32 %v2421, 0.0
        %v2759 = vmax.f32 %v2423, 0.0
        %v2760 = vmax.f32 %v2614, 0.0
        %v2761 = vmax.f32 %v2616, 0.0
        %v2762 = vmax.f32 %v2427, 0.0
        %v2763 = vmax.f32 %v2429, 0.0
        %v2764 = vmax.f32 %v2620, 0.0
        %v2765 = vmax.f32 %v2622, 0.0
        %v2766 = vmax.f32 %v2431, 0.0
        %v2767 = vmax.f32 %v2433, 0.0
        %v2768 = vmax.f32 %v2624, 0.0
        %v2769 = vmax.f32 %v2626, 0.0
        %v2770 = vmax.f32 %v2437, 0.0
        %v2771 = vmax.f32 %v2439, 0.0
        %v2772 = vmax.f32 %v2630, 0.0
        %v2773 = vmax.f32 %v2632, 0.0
        %v2774 = vmax.f32 %v2441, 0.0
        %v2775 = vmax.f32 %v2443, 0.0
        %v2776 = vmax.f32 %v2634, 0.0
        %v2777 = vmax.f32 %v2636, 0.0
        %v2778 = vmax.f32 %v2447, 0.0
        %v2779 = vmax.f32 %v2449, 0.0
        %v2780 = vmax.f32 %v2640, 0.0
        %v2781 = vmax.f32 %v2642, 0.0
        %v2782 = vmax.f32 %v2451, 0.0
        %v2783 = vmax.f32 %v2453, 0.0
        %v2784 = vmax.f32 %v2644, 0.0
        %v2785 = vmax.f32 %v2646, 0.0
        %v2786 = vmax.f32 %v2457, 0.0
        %v2787 = vmax.f32 %v2459, 0.0
        %v2788 = vmax.f32 %v2650, 0.0
        %v2789 = vmax.f32 %v2652, 0.0
        %v2790 = vmax.f32 %v2461, 0.0
        %v2791 = vmax.f32 %v2463, 0.0
        %v2792 = vmax.f32 %v2654, 0.0
        %v2793 = vmax.f32 %v2656, 0.0
        %v2794 = vmax.f32 %v2467, 0.0
        %v2795 = vmax.f32 %v2469, 0.0
        %v2796 = vmax.f32 %v2660, 0.0
        %v2797 = vmax.f32 %v2662, 0.0
        %v2798 = vmax.f32 %v2471, 0.0
        %v2799 = vmax.f32 %v2473, 0.0
        %v2800 = vmax.f32 %v2664, 0.0
        %v2801 = vmax.f32 %v2666, 0.0
        %v2802 = vmax.f32 %v2477, 0.0
        %v2803 = vmax.f32 %v2479, 0.0
        %v2804 = vmax.f32 %v2670, 0.0
        %v2805 = vmax.f32 %v2672, 0.0
        %v2806 = vmax.f32 %v2481, 0.0
        %v2807 = vmax.f32 %v2483, 0.0
        %v2808 = vmax.f32 %v2674, 0.0
        %v2809 = vmax.f32 %v2676, 0.0
        %v2810 = vmax.f32 %v2487, 0.0
        %v2811 = vmax.f32 %v2489, 0.0
        %v2812 = vmax.f32 %v2680, 0.0
        %v2813 = vmax.f32 %v2682, 0.0
        %v2814 = vmax.f32 %v2491, 0.0
        %v2815 = vmax.f32 %v2493, 0.0
        %v2816 = vmax.f32 %v2684, 0.0
        %v2817 = vmax.f32 %v2686, 0.0
        %v2818 = vmax.f32 %v2497, 0.0
        %v2819 = vmax.f32 %v2499, 0.0
        %v2820 = vmax.f32 %v2690, 0.0
        %v2821 = vmax.f32 %v2692, 0.0
        %v2822 = vmax.f32 %v2501, 0.0
        %v2823 = vmax.f32 %v2503, 0.0
        %v2824 = vmax.f32 %v2694, 0.0
        %v2825 = vmax.f32 %v2696, 0.0
        %2826 = vst [vmem:[%s404] sm:$0xff] %v2698
        %2827 = vst [vmem:[%s404 + $0x8] sm:$0xff] %v2699
        %2828 = vst [vmem:[%s404 + $0x10] sm:$0xff] %v2700
        %2829 = vst [vmem:[%s404 + $0x18] sm:$0xff] %v2701
        %2830 = vst [vmem:[%s404 + $0x20] sm:$0xff] %v2702
        %2831 = vst [vmem:[%s404 + $0x28] sm:$0xff] %v2703
        %2832 = vst [vmem:[%s404 + $0x30] sm:$0xff] %v2704
        %2833 = vst [vmem:[%s404 + $0x38] sm:$0xff] %v2705
        %2834 = vst [vmem:[%s404 + $0x40] sm:$0xff] %v2706
        %2835 = vst [vmem:[%s404 + $0x48] sm:$0xff] %v2707
        %2836 = vst [vmem:[%s404 + $0x50] sm:$0xff] %v2708
        %2837 = vst [vmem:[%s404 + $0x58] sm:$0xff] %v2709
        %2838 = vst [vmem:[%s404 + $0x60] sm:$0xff] %v2710
        %2839 = vst [vmem:[%s404 + $0x68] sm:$0xff] %v2711
        %2840 = vst [vmem:[%s404 + $0x70] sm:$0xff] %v2712
        %2841 = vst [vmem:[%s404 + $0x78] sm:$0xff] %v2713
        %2842 = vst [vmem:[%s404 + $0x80] sm:$0xff] %v2714
        %2843 = vst [vmem:[%s404 + $0x88] sm:$0xff] %v2715
        %2844 = vst [vmem:[%s404 + $0x90] sm:$0xff] %v2716
        %2845 = vst [vmem:[%s404 + $0x98] sm:$0xff] %v2717
        %2846 = vst [vmem:[%s404 + $0xa0] sm:$0xff] %v2718
        %2847 = vst [vmem:[%s404 + $0xa8] sm:$0xff] %v2719
        %2848 = vst [vmem:[%s404 + $0xb0] sm:$0xff] %v2720
        %2849 = vst [vmem:[%s404 + $0xb8] sm:$0xff] %v2721
        %2850 = vst [vmem:[%s404 + $0xc0] sm:$0xff] %v2722
        %2851 = vst [vmem:[%s404 + $0xc8] sm:$0xff] %v2723
        %2852 = vst [vmem:[%s404 + $0xd0] sm:$0xff] %v2724
        %2853 = vst [vmem:[%s404 + $0xd8] sm:$0xff] %v2725
        %2854 = vst [vmem:[%s404 + $0xe0] sm:$0xff] %v2726
        %2855 = vst [vmem:[%s404 + $0xe8] sm:$0xff] %v2727
        %2856 = vst [vmem:[%s404 + $0xf0] sm:$0xff] %v2728
        %2857 = vst [vmem:[%s404 + $0xf8] sm:$0xff] %v2729
        %2858 = vst [vmem:[%s404 + $0x100] sm:$0xff] %v2730
        %2859 = vst [vmem:[%s404 + $0x108] sm:$0xff] %v2731
        %2860 = vst [vmem:[%s404 + $0x110] sm:$0xff] %v2732
        %2861 = vst [vmem:[%s404 + $0x118] sm:$0xff] %v2733
        %2862 = vst [vmem:[%s404 + $0x120] sm:$0xff] %v2734
        %2863 = vst [vmem:[%s404 + $0x128] sm:$0xff] %v2735
        %2864 = vst [vmem:[%s404 + $0x130] sm:$0xff] %v2736
        %2865 = vst [vmem:[%s404 + $0x138] sm:$0xff] %v2737
        %2866 = vst [vmem:[%s404 + $0x140] sm:$0xff] %v2738
        %2867 = vst [vmem:[%s404 + $0x148] sm:$0xff] %v2739
        %2868 = vst [vmem:[%s404 + $0x150] sm:$0xff] %v2740
        %2869 = vst [vmem:[%s404 + $0x158] sm:$0xff] %v2741
        %2870 = vst [vmem:[%s404 + $0x160] sm:$0xff] %v2742
        %2871 = vst [vmem:[%s404 + $0x168] sm:$0xff] %v2743
        %2872 = vst [vmem:[%s404 + $0x170] sm:$0xff] %v2744
        %2873 = vst [vmem:[%s404 + $0x178] sm:$0xff] %v2745
        %2874 = vst [vmem:[%s404 + $0x180] sm:$0xff] %v2746
        %2875 = vst [vmem:[%s404 + $0x188] sm:$0xff] %v2747
        %2876 = vst [vmem:[%s404 + $0x190] sm:$0xff] %v2748
        %2877 = vst [vmem:[%s404 + $0x198] sm:$0xff] %v2749
        %2878 = vst [vmem:[%s404 + $0x1a0] sm:$0xff] %v2750
        %2879 = vst [vmem:[%s404 + $0x1a8] sm:$0xff] %v2751
        %2880 = vst [vmem:[%s404 + $0x1b0] sm:$0xff] %v2752
        %2881 = vst [vmem:[%s404 + $0x1b8] sm:$0xff] %v2753
        %2882 = vst [vmem:[%s404 + $0x1c0] sm:$0xff] %v2754
        %2883 = vst [vmem:[%s404 + $0x1c8] sm:$0xff] %v2755
        %2884 = vst [vmem:[%s404 + $0x1d0] sm:$0xff] %v2756
        %2885 = vst [vmem:[%s404 + $0x1d8] sm:$0xff] %v2757
        %2886 = vst [vmem:[%s404 + $0x1e0] sm:$0xff] %v2758
        %2887 = vst [vmem:[%s404 + $0x1e8] sm:$0xff] %v2759
        %2888 = vst [vmem:[%s404 + $0x1f0] sm:$0xff] %v2760
        %2889 = vst [vmem:[%s404 + $0x1f8] sm:$0xff] %v2761
        %2890 = vst [vmem:[%s404 + $0x200] sm:$0xff] %v2762
        %2891 = vst [vmem:[%s404 + $0x208] sm:$0xff] %v2763
        %2892 = vst [vmem:[%s404 + $0x210] sm:$0xff] %v2764
        %2893 = vst [vmem:[%s404 + $0x218] sm:$0xff] %v2765
        %2894 = vst [vmem:[%s404 + $0x220] sm:$0xff] %v2766
        %2895 = vst [vmem:[%s404 + $0x228] sm:$0xff] %v2767
        %2896 = vst [vmem:[%s404 + $0x230] sm:$0xff] %v2768
        %2897 = vst [vmem:[%s404 + $0x238] sm:$0xff] %v2769
        %2898 = vst [vmem:[%s404 + $0x240] sm:$0xff] %v2770
        %2899 = vst [vmem:[%s404 + $0x248] sm:$0xff] %v2771
        %2900 = vst [vmem:[%s404 + $0x250] sm:$0xff] %v2772
        %2901 = vst [vmem:[%s404 + $0x258] sm:$0xff] %v2773
        %2902 = vst [vmem:[%s404 + $0x260] sm:$0xff] %v2774
        %2903 = vst [vmem:[%s404 + $0x268] sm:$0xff] %v2775
        %2904 = vst [vmem:[%s404 + $0x270] sm:$0xff] %v2776
        %2905 = vst [vmem:[%s404 + $0x278] sm:$0xff] %v2777
        %2906 = vst [vmem:[%s404 + $0x280] sm:$0xff] %v2778
        %2907 = vst [vmem:[%s404 + $0x288] sm:$0xff] %v2779
        %2908 = vst [vmem:[%s404 + $0x290] sm:$0xff] %v2780
        %2909 = vst [vmem:[%s404 + $0x298] sm:$0xff] %v2781
        %2910 = vst [vmem:[%s404 + $0x2a0] sm:$0xff] %v2782
        %2911 = vst [vmem:[%s404 + $0x2a8] sm:$0xff] %v2783
        %2912 = vst [vmem:[%s404 + $0x2b0] sm:$0xff] %v2784
        %2913 = vst [vmem:[%s404 + $0x2b8] sm:$0xff] %v2785
        %2914 = vst [vmem:[%s404 + $0x2c0] sm:$0xff] %v2786
        %2915 = vst [vmem:[%s404 + $0x2c8] sm:$0xff] %v2787
        %2916 = vst [vmem:[%s404 + $0x2d0] sm:$0xff] %v2788
        %2917 = vst [vmem:[%s404 + $0x2d8] sm:$0xff] %v2789
        %2918 = vst [vmem:[%s404 + $0x2e0] sm:$0xff] %v2790
        %2919 = vst [vmem:[%s404 + $0x2e8] sm:$0xff] %v2791
        %2920 = vst [vmem:[%s404 + $0x2f0] sm:$0xff] %v2792
        %2921 = vst [vmem:[%s404 + $0x2f8] sm:$0xff] %v2793
        %2922 = vst [vmem:[%s404 + $0x300] sm:$0xff] %v2794
        %2923 = vst [vmem:[%s404 + $0x308] sm:$0xff] %v2795
        %2924 = vst [vmem:[%s404 + $0x310] sm:$0xff] %v2796
        %2925 = vst [vmem:[%s404 + $0x318] sm:$0xff] %v2797
        %2926 = vst [vmem:[%s404 + $0x320] sm:$0xff] %v2798
        %2927 = vst [vmem:[%s404 + $0x328] sm:$0xff] %v2799
        %2928 = vst [vmem:[%s404 + $0x330] sm:$0xff] %v2800
        %2929 = vst [vmem:[%s404 + $0x338] sm:$0xff] %v2801
        %2930 = vst [vmem:[%s404 + $0x340] sm:$0xff] %v2802
        %2931 = vst [vmem:[%s404 + $0x348] sm:$0xff] %v2803
        %2932 = vst [vmem:[%s404 + $0x350] sm:$0xff] %v2804
        %2933 = vst [vmem:[%s404 + $0x358] sm:$0xff] %v2805
        %2934 = vst [vmem:[%s404 + $0x360] sm:$0xff] %v2806
        %2935 = vst [vmem:[%s404 + $0x368] sm:$0xff] %v2807
        %2936 = vst [vmem:[%s404 + $0x370] sm:$0xff] %v2808
        %2937 = vst [vmem:[%s404 + $0x378] sm:$0xff] %v2809
        %2938 = vst [vmem:[%s404 + $0x380] sm:$0xff] %v2810
        %2939 = vst [vmem:[%s404 + $0x388] sm:$0xff] %v2811
        %2940 = vst [vmem:[%s404 + $0x390] sm:$0xff] %v2812
        %2941 = vst [vmem:[%s404 + $0x398] sm:$0xff] %v2813
        %2942 = vst [vmem:[%s404 + $0x3a0] sm:$0xff] %v2814
        %2943 = vst [vmem:[%s404 + $0x3a8] sm:$0xff] %v2815
        %2944 = vst [vmem:[%s404 + $0x3b0] sm:$0xff] %v2816
        %2945 = vst [vmem:[%s404 + $0x3b8] sm:$0xff] %v2817
        %2946 = vst [vmem:[%s404 + $0x3c0] sm:$0xff] %v2818
        %2947 = vst [vmem:[%s404 + $0x3c8] sm:$0xff] %v2819
        %2948 = vst [vmem:[%s404 + $0x3d0] sm:$0xff] %v2820
        %2949 = vst [vmem:[%s404 + $0x3d8] sm:$0xff] %v2821
        %2950 = vst [vmem:[%s404 + $0x3e0] sm:$0xff] %v2822
        %2951 = vst [vmem:[%s404 + $0x3e8] sm:$0xff] %v2823
        %2952 = vst [vmem:[%s404 + $0x3f0] sm:$0xff] %v2824
        %2953 = vst [vmem:[%s404 + $0x3f8] sm:$0xff] %v2825
        %s2954 = sand.u32 %s285, 1
        %s2955 = scalar_lea.sflag [#allocation3], %s2954
        %s2956 = sand.u32 %s285, 1
        %s2957 = smul.addr %s2956, 1024
        %s2958 = scalar_lea.vmem [#allocation2], %s2957
        // Predicated region
        $region65: #{tpu_custom_call.1} parent=63 // pred_check
          %p2959 = pneg %p295
        $region66: #{tpu_custom_call.1} parent=63 // pred_check_branch
          %2961 = sbr.rel (%p2959) target = $region68
        $region67: #{tpu_custom_call.1} parent=63 // pred_region
          %s2962 = smul.u32 4, %s30
          %s2964 = ssub.s32 16384, 16384
          %2965 = vsyncadd %s2955, %s2964
          %s2966 = smul.addr %s29, 128
          %s2967 = sadd.s32 %s2962, %s2966
          %s2968 = smul.addr %s2967, 128
          %s2969 = scalar_lea.hbm %s11, %s2968
          %s2970 = sshll.u32 %s2958, 4
          %s2971 = int_to_ptr.vmem [resolvable:$true] %s2970
          %2976 = dma.vmem_to_hbm [thread:$0]  %s2971, 16384, %s2969, %s2955, 512, 512, 32
        $region68: #{tpu_custom_call.1} parent=63 // pred_fallthru
          _
      $region64: #{tpu_custom_call.1} parent=5 // pred_fallthru
        _
      %p2977 = scmp.le.s32.totalorder 2, %s20
      // Predicated region
      $region69: #{tpu_custom_call.1} parent=5 // pred_check
        %p2978 = pneg %p2977
      $region70: #{tpu_custom_call.1} parent=5 // pred_check_branch
        %2980 = sbr.rel (%p2978) target = $region72
      $region71: #{tpu_custom_call.1} parent=5 // pred_region
        %s2981 = ssub.s32 %s20, 2
        // Predicated region
        $region73: #{tpu_custom_call.1} parent=71 // pred_check
          %p2982 = pneg %p301
        $region74: #{tpu_custom_call.1} parent=71 // pred_check_branch
          %2984 = sbr.rel (%p2982) target = $region76
        $region75: #{tpu_custom_call.1} parent=71 // pred_region
          %s2985 = sand.u32 %s286, 1
          %s2986 = scalar_lea.sflag [#allocation3], %s2985
          %s2987 = sand.u32 %s286, 1
          %s2988 = smul.addr %s2987, 1024
          %s2989 = scalar_lea.vmem [#allocation2], %s2988
          %2990 = dma.done %s2986, 16384
        $region76: #{tpu_custom_call.1} parent=71 // pred_fallthru
          _
      $region72: #{tpu_custom_call.1} parent=5 // pred_fallthru
        _
    $region6: #{tpu_custom_call.1} parent=1 // loop_footer
      %s24 = sadd.s32 1, %s20
    $region7: #{tpu_custom_call.1} parent=1 // loop_footer_branch
      %19 = sbr.rel target = $region3
    $region8: #{tpu_custom_call.1} parent=1 // loop_exit
      _
    %2991 = vsyncpa [#allocation3], 1
    %s2992 = scalar_lea.sflag [#allocation3], 1
    %2993 = vsyncpa %s2992, 1

</llo_original>
